<compile_context>
chip_gen: v7x
topology: tpu7x:2x2x1
jax: 0.10.0
libtpu: 0.0.40
codegen_flags: <defaults>
</compile_context>

<pallas_src>
import functools

import jax
import jax.numpy as jnp
from jax import lax
from jax.experimental import pallas as pl
from jax.experimental.pallas import tpu as pltpu


def _graph_conv_kernel(filter_length, M, a_ref, x_ref, h_ref, w_ref, b_ref,
                       out_ref):
    # Block shapes:
    #   a_ref  : (Bt, N, N)   adjacency block
    #   x_ref  : (Bt, N, F)   node-feature block
    #   h_ref  : (K,)         filter taps (SMEM scalars)
    #   w_ref  : (F, 2M)      linear weight, pre-transposed (grid-invariant)
    #   b_ref  : (1, 2M)      linear bias (grid-invariant)
    #   out_ref: (Bt, 1, 2M)  packed [mean | exp(std)]
    A = a_ref[...]
    X = x_ref[...]
    bt, n, _ = A.shape

    # Row-vector Horner evaluation of t = 1^T * (sum_k h[k] A^k).
    # All matmuls use the well-supported batched 'b..,b..->b..' pattern.
    ones_row = jnp.ones((bt, 1, n), dtype=jnp.float32)          # hoisted
    t = h_ref[filter_length - 1] * ones_row
    for k in range(filter_length - 2, -1, -1):
        t = jnp.einsum('bin,bnj->bij', t, A,
                       preferred_element_type=jnp.float32) + h_ref[k] * ones_row

    # graph_state = t @ X  (node sum already folded in)      -> (Bt, 1, F)
    graph_state = jnp.einsum('bin,bnf->bif', t, X,
                             preferred_element_type=jnp.float32)

    # Output head: Linear(F, 2M), kept batched to avoid mid-axis relayouts.
    w_b = jnp.broadcast_to(w_ref[...], (bt,) + tuple(w_ref.shape))
    out = jnp.einsum('bif,bfo->bio', graph_state, w_b,
                     preferred_element_type=jnp.float32)
    out = out + b_ref[...]                                      # (Bt, 1, 2M)

    # Single lane-packed store: columns [0, M) = mean, [M, 2M) = exp(std).
    col = lax.broadcasted_iota(jnp.int32, out.shape, dimension=2)
    out_ref[...] = jnp.where(col < M, out, jnp.exp(out))


def _pick_block_b(B, N, F, M, max_block_bytes=8 * 1024 * 1024):
    """Largest batch block that (a) divides B, (b) keeps the double-buffered
    input/output blocks well under the 32 MiB default scoped VMEM limit (and
    far under v7x's 64 MiB physical VMEM), and (c) leaves >= 2 grid steps so
    the "parallel" batch axis can be split across v7x's two TensorCores."""
    bytes_per_graph = 4 * (N * N + N * F + 2 * M)           # f32 A + X + out
    cap = max(1, max_block_bytes // (2 * bytes_per_graph))  # x2 double buffer
    if B >= 2:
        cap = min(cap, B // 2)
    cap = max(1, min(cap, B))
    for bt in range(cap, 0, -1):
        if B % bt == 0:
            return bt
    return 1


def simple_graph_conv_forward(X, A, h, W, b, M=1, block_b=None):
    """Returns (mean, scale) of the Independent Normal, each (B, M)."""
    B, N, F = X.shape
    K = h.shape[0]
    if block_b is None:
        block_b = _pick_block_b(B, N, F, M)
    assert B % block_b == 0, (B, block_b)

    A = A.astype(jnp.float32)
    X = X.astype(jnp.float32)
    W_t = W.T.astype(jnp.float32)                  # (F, 2M)
    b2 = b.reshape(1, 2 * M).astype(jnp.float32)   # (1, 2M)

    kernel = functools.partial(_graph_conv_kernel, K, M)
    packed = pl.pallas_call(
        kernel,
        out_shape=jax.ShapeDtypeStruct((B, 1, 2 * M), jnp.float32),
        grid_spec=pltpu.PrefetchScalarGridSpec(
            num_scalar_prefetch=0,
            grid=(B // block_b,),
            in_specs=[
                pl.BlockSpec((block_b, N, N), lambda i: (i, 0, 0)),   # A
                pl.BlockSpec((block_b, N, F), lambda i: (i, 0, 0)),   # X
                pl.BlockSpec(memory_space=pltpu.MemorySpace.SMEM),    # h taps
                pl.BlockSpec((F, 2 * M), lambda i: (0, 0)),           # W^T
                pl.BlockSpec((1, 2 * M), lambda i: (0, 0)),           # bias
            ],
            out_specs=pl.BlockSpec((block_b, 1, 2 * M), lambda i: (i, 0, 0)),
        ),
        compiler_params=pltpu.CompilerParams(
            dimension_semantics=("parallel",)),
    )(A, X, h.astype(jnp.float32), W_t, b2)

    mean = packed[:, 0, :M]
    scale = packed[:, 0, M:]
    return mean, scale


def reference_forward_spectral(X, A, h, W, b, M=1):
    """Pure-JAX mirror of the PyTorch forward (eigh-based spectral filter)."""
    hp = lax.Precision.HIGHEST
    lam, U = jnp.linalg.eigh(A)
    K = h.shape[0]
    poly = jnp.zeros_like(lam)
    for k in range(K):
        poly = poly + h[k] * lam ** k
    node_state = jnp.einsum('bij,bj,bkj,bkf->bif', U, poly, U, X, precision=hp)
    graph_state = node_state.sum(axis=1)
    out = jnp.dot(graph_state, W.T, precision=hp) + b
    mean, std = out[:, :M], out[:, M:]
    return mean, jnp.exp(std)


def reference_forward_polynomial(X, A, h, W, b, M=1):
    """Same forward evaluated directly in A (graph_state = 1^T p(A) X)."""
    hp = lax.Precision.HIGHEST
    B, N, _ = A.shape
    K = h.shape[0]
    ones_row = jnp.ones((B, 1, N), dtype=jnp.float32)
    t = h[K - 1] * ones_row
    for k in range(K - 2, -1, -1):
        t = jnp.einsum('bin,bnj->bij', t, A, precision=hp) + h[k] * ones_row
    graph_state = jnp.einsum('bin,bnf->bif', t, X, precision=hp)[:, 0, :]
    out = jnp.dot(graph_state, W.T, precision=hp) + b
    mean, std = out[:, :M], out[:, M:]
    return mean, jnp.exp(std)


if __name__ == "__main__":
    B, N, F, K, M = 8, 16, 8, 3, 1

    key = jax.random.PRNGKey(0)
    kx, ka, kh, kw, kb = jax.random.split(key, 5)

    # Node features.
    X = jax.random.normal(kx, (B, N, F), dtype=jnp.float32)

    # Symmetric 0/1 adjacency with zero diagonal.
    R = (jax.random.uniform(ka, (B, N, N)) < 0.3).astype(jnp.float32)
    upper = jnp.triu(R, k=1)
    A = upper + jnp.swapaxes(upper, -1, -2)

    # Parameters mirroring the module's __init__.
    h = 1e-5 * jax.random.normal(kh, (K,), dtype=jnp.float32)
    h = h.at[0].set(1.0)
    bound = 1.0 / jnp.sqrt(F)
    W = jax.random.uniform(kw, (2 * M, F), minval=-bound, maxval=bound,
                           dtype=jnp.float32)
    b = jax.random.uniform(kb, (2 * M,), minval=-bound, maxval=bound,
                           dtype=jnp.float32)

    mean, scale = simple_graph_conv_forward(X, A, h, W, b, M=M)
    jax.block_until_ready((mean, scale))

    # Tight check against the algorithm the kernel implements (direct p(A)).
    mean_p, scale_p = reference_forward_polynomial(X, A, h, W, b, M=M)
    assert jnp.allclose(mean, mean_p, rtol=1e-4, atol=1e-4), (mean, mean_p)
    assert jnp.allclose(scale, scale_p, rtol=1e-4, atol=1e-4), (scale, scale_p)

    # Cross-check against the module's literal eigh-based formulation; looser
    # tolerance absorbs the reference's own f32 eigh reconstruction error
    # (U diag(p(L)) U^T == p(A) exactly in exact arithmetic).
    mean_s, scale_s = reference_forward_spectral(X, A, h, W, b, M=M)
    assert jnp.allclose(mean, mean_s, rtol=5e-3, atol=5e-3), (mean, mean_s)
    assert jnp.allclose(scale, scale_s, rtol=5e-3, atol=5e-3), (scale, scale_s)

    # TODO(synk): the torch module returns a td.Independent(Normal) object;
    # here we return its (mean, scale) parameters instead.
    print("KERNEL_OK")
</pallas_src>

<mosaic_0001>
module attributes {stable_mosaic.version = 11 : i64} {
  func.func @_graph_conv_kernel(%arg0: i32, %arg1: memref<4x16x16xf32, #tpu.memory_space<vmem>>, %arg2: memref<4x16x8xf32, #tpu.memory_space<vmem>>, %arg3: memref<3xf32, #tpu.memory_space<smem>>, %arg4: memref<8x2xf32, #tpu.memory_space<vmem>>, %arg5: memref<1x2xf32, #tpu.memory_space<vmem>>, %arg6: memref<4x1x2xf32, #tpu.memory_space<vmem>>) attributes {dimension_semantics = [#tpu.dimension_semantics<parallel>], iteration_bounds = array<i64: 2>, scalar_prefetch = 0 : i64, scratch_operands = 0 : i64, tpu.core_type = #tpu.core_type<tc>, window_params = [{transform_indices = @transform_0, window_bounds = array<i64: 4, 16, 16>}, {transform_indices = @transform_1, window_bounds = array<i64: 4, 16, 8>}, {transform_indices = @transform_2, window_bounds = array<i64: 3>}, {pipeline_mode = #tpu.pipeline_mode<synchronous>, transform_indices = @transform_3, window_bounds = array<i64: 8, 2>}, {pipeline_mode = #tpu.pipeline_mode<synchronous>, transform_indices = @transform_4, window_bounds = array<i64: 1, 2>}, {transform_indices = @transform_5, window_bounds = array<i64: 4, 1, 2>}]} {
    %c0 = arith.constant 0 : index
    %c0_0 = arith.constant 0 : index
    %c0_1 = arith.constant 0 : index
    %0 = vector.load %arg1[%c0, %c0_0, %c0_1] : memref<4x16x16xf32, #tpu.memory_space<vmem>>, vector<4x16x16xf32>
    %c0_2 = arith.constant 0 : index
    %c0_3 = arith.constant 0 : index
    %c0_4 = arith.constant 0 : index
    %1 = vector.load %arg2[%c0_2, %c0_3, %c0_4] : memref<4x16x8xf32, #tpu.memory_space<vmem>>, vector<4x16x8xf32>
    %cst = arith.constant 1.000000e+00 : f32
    %2 = vector.broadcast %cst : f32 to vector<4x1x16xf32>
    %c2 = arith.constant 2 : index
    %3 = memref.load %arg3[%c2] : memref<3xf32, #tpu.memory_space<smem>>
    %4 = vector.broadcast %3 : f32 to vector<4x1x16xf32>
    %5 = arith.mulf %4, %2 : vector<4x1x16xf32>
    "tpu.trace_start"() <{level = 10 : i32, message = "bin,bnj->bij"}> : () -> ()
    %cst_5 = arith.constant dense<0.000000e+00> : vector<4x1x16xf32>
    %6 = tpu.matmul %5, %0, %cst_5 {dimension_numbers = #tpu.dot_dimension_numbers<[2], [1], [1], [2], [0, 0, 0, 1, 1, 2], [0], [0]>} : vector<4x1x16xf32>, vector<4x16x16xf32>, vector<4x1x16xf32> -> vector<4x1x16xf32>
    "tpu.trace_stop"() : () -> ()
    %c1 = arith.constant 1 : index
    %7 = memref.load %arg3[%c1] : memref<3xf32, #tpu.memory_space<smem>>
    %8 = vector.broadcast %7 : f32 to vector<4x1x16xf32>
    %9 = arith.mulf %8, %2 : vector<4x1x16xf32>
    %10 = arith.addf %6, %9 : vector<4x1x16xf32>
    "tpu.trace_start"() <{level = 10 : i32, message = "bin,bnj->bij"}> : () -> ()
    %cst_6 = arith.constant dense<0.000000e+00> : vector<4x1x16xf32>
    %11 = tpu.matmul %10, %0, %cst_6 {dimension_numbers = #tpu.dot_dimension_numbers<[2], [1], [1], [2], [0, 0, 0, 1, 1, 2], [0], [0]>} : vector<4x1x16xf32>, vector<4x16x16xf32>, vector<4x1x16xf32> -> vector<4x1x16xf32>
    "tpu.trace_stop"() : () -> ()
    %c0_7 = arith.constant 0 : index
    %12 = memref.load %arg3[%c0_7] : memref<3xf32, #tpu.memory_space<smem>>
    %13 = vector.broadcast %12 : f32 to vector<4x1x16xf32>
    %14 = arith.mulf %13, %2 : vector<4x1x16xf32>
    %15 = arith.addf %11, %14 : vector<4x1x16xf32>
    "tpu.trace_start"() <{level = 10 : i32, message = "bin,bnf->bif"}> : () -> ()
    %cst_8 = arith.constant dense<0.000000e+00> : vector<4x1x8xf32>
    %16 = tpu.matmul %15, %1, %cst_8 {dimension_numbers = #tpu.dot_dimension_numbers<[2], [1], [1], [2], [0, 0, 0, 1, 1, 2], [0], [0]>} : vector<4x1x16xf32>, vector<4x16x8xf32>, vector<4x1x8xf32> -> vector<4x1x8xf32>
    "tpu.trace_stop"() : () -> ()
    %c0_9 = arith.constant 0 : index
    %c0_10 = arith.constant 0 : index
    %17 = vector.load %arg4[%c0_9, %c0_10] : memref<8x2xf32, #tpu.memory_space<vmem>>, vector<8x2xf32>
    %18 = vector.shape_cast %17 : vector<8x2xf32> to vector<1x8x2xf32>
    %19 = vector.broadcast %18 : vector<1x8x2xf32> to vector<4x8x2xf32>
    "tpu.trace_start"() <{level = 10 : i32, message = "bif,bfo->bio"}> : () -> ()
    %cst_11 = arith.constant dense<0.000000e+00> : vector<4x1x2xf32>
    %20 = tpu.matmul %16, %19, %cst_11 {dimension_numbers = #tpu.dot_dimension_numbers<[2], [1], [1], [2], [0, 0, 0, 1, 1, 2], [0], [0]>} : vector<4x1x8xf32>, vector<4x8x2xf32>, vector<4x1x2xf32> -> vector<4x1x2xf32>
    "tpu.trace_stop"() : () -> ()
    %c0_12 = arith.constant 0 : index
    %c0_13 = arith.constant 0 : index
    %21 = vector.load %arg5[%c0_12, %c0_13] : memref<1x2xf32, #tpu.memory_space<vmem>>, vector<1x2xf32>
    %22 = vector.shape_cast %21 : vector<1x2xf32> to vector<1x1x2xf32>
    %23 = vector.broadcast %22 : vector<1x1x2xf32> to vector<4x1x2xf32>
    %24 = arith.addf %20, %23 : vector<4x1x2xf32>
    %25 = tpu.iota {dimensions = array<i32: 2>} : vector<4x1x2xi32>
    %c1_i32 = arith.constant 1 : i32
    %26 = vector.broadcast %c1_i32 : i32 to vector<4x1x2xi32>
    %27 = arith.cmpi slt, %25, %26 : vector<4x1x2xi32>
    %28 = math.exp %24 : vector<4x1x2xf32>
    %29 = arith.select %27, %24, %28 : vector<4x1x2xi1>, vector<4x1x2xf32>
    %c0_14 = arith.constant 0 : index
    %c0_15 = arith.constant 0 : index
    %c0_16 = arith.constant 0 : index
    %30 = vector.load %arg6[%c0_14, %c0_15, %c0_16] : memref<4x1x2xf32, #tpu.memory_space<vmem>>, vector<4x1x2xf32>
    tpu.vector_store %arg6[%c0_14, %c0_15, %c0_16], %29 {strides = array<i32>} : memref<4x1x2xf32, #tpu.memory_space<vmem>>, vector<4x1x2xf32>,
    return
  }
  func.func @transform_0(%arg0: i32) -> (i32, i32, i32) {
    %c0_i32 = arith.constant 0 : i32
    %c0_i32_0 = arith.constant 0 : i32
    %c0_i32_1 = arith.constant 0 : i32
    return %arg0, %c0_i32, %c0_i32_0 : i32, i32, i32
  }
  func.func @transform_1(%arg0: i32) -> (i32, i32, i32) {
    %c0_i32 = arith.constant 0 : i32
    %c0_i32_0 = arith.constant 0 : i32
    %c0_i32_1 = arith.constant 0 : i32
    return %arg0, %c0_i32, %c0_i32_0 : i32, i32, i32
  }
  func.func @transform_2(%arg0: i32) -> i32 {
    %c0_i32 = arith.constant 0 : i32
    %c0_i32_0 = arith.constant 0 : i32
    return %c0_i32 : i32
  }
  func.func @transform_3(%arg0: i32) -> (i32, i32) {
    %c0_i32 = arith.constant 0 : i32
    %c0_i32_0 = arith.constant 0 : i32
    %c0_i32_1 = arith.constant 0 : i32
    return %c0_i32, %c0_i32_0 : i32, i32
  }
  func.func @transform_4(%arg0: i32) -> (i32, i32) {
    %c0_i32 = arith.constant 0 : i32
    %c0_i32_0 = arith.constant 0 : i32
    %c0_i32_1 = arith.constant 0 : i32
    return %c0_i32, %c0_i32_0 : i32, i32
  }
  func.func @transform_5(%arg0: i32) -> (i32, i32, i32) {
    %c0_i32 = arith.constant 0 : i32
    %c0_i32_0 = arith.constant 0 : i32
    %c0_i32_1 = arith.constant 0 : i32
    return %arg0, %c0_i32, %c0_i32_0 : i32, i32, i32
  }
}

</mosaic_0001>

<llo_original>
// kernel: tpu_custom_call.1
$region0: #{tpu_custom_call.1}
  #allocation0 [shape = 'u32[]', space=smem, size = 0x4, offset = 0x4, fixed_abs, tag = 'smem constant byte address 0x4 - core index']
  #allocation1 [shape = 'u32[144,128]{1,0:T(1,128)}', space=vmem, size = 0x12000, scoped, tag = 'internal scratch']
  %s0 = inlined_call_operand.vmem [shape: f32[8,16,16], index: 0, kind: input, shape index: {}]
  %s1 = inlined_call_operand.vmem [shape: f32[8,16,8], index: 1, kind: input, shape index: {}]
  %s2 = inlined_call_operand.vmem [shape: f32[3], index: 2, kind: input, shape index: {}]
  %s3 = inlined_call_operand.vmem [shape: f32[8,2], index: 3, kind: input, shape index: {}]
  %s4 = inlined_call_operand.vmem [shape: f32[1,2], index: 4, kind: input, shape index: {}]
  %s5 = inlined_call_operand.vmem [shape: f32[8,1,2], index: 5, kind: output, shape index: {}]
  %s6 = sld [smem:[#allocation0]]
  $region57: #{tpu_custom_call.1} parent=0
    _
  %s8 = ssub.s32 1, %s6
  %s9 = scalar_select 0, %s8, %s6
  $region1: #{tpu_custom_call.1} parent=0
    #allocation2 [shape = 'u8[512]{0}', space=smem, size = 0x200, scoped, tag = 'input window, operand 2, single buffered']
    #allocation3 [shape = 's32[2]{0}', space=sflag, size = 0x8, scoped, tag = 'scoped memory for tpu_custom_call.1']
    %10 = vsyncpa [#allocation3], 0
    loop: start=0, step=1, limit=4
    $region2: #{tpu_custom_call.1} parent=1 // loop_pre_header
      _
    $region3: #{tpu_custom_call.1} parent=1 // loop_header
      %s12 = sphi 0, %s16
      %p13 = scmp.ge.s32.totalorder %s12, 4
      %s22 = sphi 0, %s24
      %s25 = sphi 0, %s22
      %s26 = sphi 0, %s25
      %s42 = sphi 0, %s26
      %s48 = sphi 0, %s50
      %s51 = sphi 0, %s48
      %s52 = sphi 0, %s51
      %s68 = sphi 0, %s52
      %s72 = sphi 0, %s72
      %s74 = sphi 0, %s72
      %s75 = sphi 0, %s74
      %s89 = sphi 0, %s75
      %s93 = sphi 0, %s93
      %s95 = sphi 0, %s93
      %s96 = sphi 0, %s95
      %s110 = sphi 0, %s96
      %s114 = sphi 0, %s114
      %s116 = sphi 0, %s114
      %s117 = sphi 0, %s116
      %s131 = sphi 0, %s117
      %s137 = sphi 0, %s139
      %s140 = sphi 0, %s137
      %s141 = sphi 0, %s140
      %s157 = sphi 0, %s141
    $region4: #{tpu_custom_call.1} parent=1 // loop_header_branch
      %15 = sbr.rel (%p13) target = $region8
    $region5: #{tpu_custom_call.1} parent=1 // loop_body
      %s17 = ssub.s32 %s12, 1
      %s18 = ssub.s32 %s12, 2
      %s19 = sadd.s32 %s12, 1
      %s20 = ssub.s32 %s12, %s19
      %p21 = scmp.eq.s32.totalorder %s20, 0
      %s23 = sadd.s32 %s22, 1
      %s24 = scalar_select %p21, %s22, %s23
      %p27 = pneg %p21
      %p28 = scmp.eq.s32.totalorder %s12, 1
      %p29 = por %p27, %p28
      %p30 = scmp.ne.s32.totalorder %s22, %s25
      %p31 = scmp.eq.s32.totalorder %s12, 0
      %p32 = por %p30, %p31
      %p33 = scmp.ne.s32.totalorder %s22, %s25
      %p34 = scmp.eq.s32.totalorder %s17, 1
      %p35 = por %p33, %p34
      %p36 = scmp.ne.s32.totalorder %s25, %s26
      %p37 = scmp.eq.s32.totalorder %s17, 0
      %p38 = por %p36, %p37
      %p39 = scmp.ne.s32.totalorder %s25, %s26
      %p40 = scmp.eq.s32.totalorder %s18, 1
      %p41 = por %p39, %p40
      %p43 = scmp.ne.s32.totalorder %s26, %s42
      %p44 = scmp.eq.s32.totalorder %s18, 0
      %p45 = por %p43, %p44
      %s46 = ssub.s32 %s12, %s19
      %p47 = scmp.eq.s32.totalorder %s46, 0
      %s49 = sadd.s32 %s48, 1
      %s50 = scalar_select %p47, %s48, %s49
      %p53 = pneg %p47
      %p54 = scmp.eq.s32.totalorder %s12, 1
      %p55 = por %p53, %p54
      %p56 = scmp.ne.s32.totalorder %s48, %s51
      %p57 = scmp.eq.s32.totalorder %s12, 0
      %p58 = por %p56, %p57
      %p59 = scmp.ne.s32.totalorder %s48, %s51
      %p60 = scmp.eq.s32.totalorder %s17, 1
      %p61 = por %p59, %p60
      %p62 = scmp.ne.s32.totalorder %s51, %s52
      %p63 = scmp.eq.s32.totalorder %s17, 0
      %p64 = por %p62, %p63
      %p65 = scmp.ne.s32.totalorder %s51, %s52
      %p66 = scmp.eq.s32.totalorder %s18, 1
      %p67 = por %p65, %p66
      %p69 = scmp.ne.s32.totalorder %s52, %s68
      %p70 = scmp.eq.s32.totalorder %s18, 0
      %p71 = por %p69, %p70
      %s73 = sadd.s32 %s72, 1
      %p76 = scmp.eq.s32.totalorder %s12, 1
      %p77 = scmp.ne.s32.totalorder %s72, %s74
      %p78 = scmp.eq.s32.totalorder %s12, 0
      %p79 = por %p77, %p78
      %p80 = scmp.ne.s32.totalorder %s72, %s74
      %p81 = scmp.eq.s32.totalorder %s17, 1
      %p82 = por %p80, %p81
      %p83 = scmp.ne.s32.totalorder %s74, %s75
      %p84 = scmp.eq.s32.totalorder %s17, 0
      %p85 = por %p83, %p84
      %p86 = scmp.ne.s32.totalorder %s74, %s75
      %p87 = scmp.eq.s32.totalorder %s18, 1
      %p88 = por %p86, %p87
      %p90 = scmp.ne.s32.totalorder %s75, %s89
      %p91 = scmp.eq.s32.totalorder %s18, 0
      %p92 = por %p90, %p91
      %s94 = sadd.s32 %s93, 1
      %p97 = scmp.eq.s32.totalorder %s12, 1
      %p98 = scmp.ne.s32.totalorder %s93, %s95
      %p99 = scmp.eq.s32.totalorder %s12, 0
      %p100 = por %p98, %p99
      %p101 = scmp.ne.s32.totalorder %s93, %s95
      %p102 = scmp.eq.s32.totalorder %s17, 1
      %p103 = por %p101, %p102
      %p104 = scmp.ne.s32.totalorder %s95, %s96
      %p105 = scmp.eq.s32.totalorder %s17, 0
      %p106 = por %p104, %p105
      %p107 = scmp.ne.s32.totalorder %s95, %s96
      %p108 = scmp.eq.s32.totalorder %s18, 1
      %p109 = por %p107, %p108
      %p111 = scmp.ne.s32.totalorder %s96, %s110
      %p112 = scmp.eq.s32.totalorder %s18, 0
      %p113 = por %p111, %p112
      %s115 = sadd.s32 %s114, 1
      %p118 = scmp.eq.s32.totalorder %s12, 1
      %p119 = scmp.ne.s32.totalorder %s114, %s116
      %p120 = scmp.eq.s32.totalorder %s12, 0
      %p121 = por %p119, %p120
      %p122 = scmp.ne.s32.totalorder %s114, %s116
      %p123 = scmp.eq.s32.totalorder %s17, 1
      %p124 = por %p122, %p123
      %p125 = scmp.ne.s32.totalorder %s116, %s117
      %p126 = scmp.eq.s32.totalorder %s17, 0
      %p127 = por %p125, %p126
      %p128 = scmp.ne.s32.totalorder %s116, %s117
      %p129 = scmp.eq.s32.totalorder %s18, 1
      %p130 = por %p128, %p129
      %p132 = scmp.ne.s32.totalorder %s117, %s131
      %p133 = scmp.eq.s32.totalorder %s18, 0
      %p134 = por %p132, %p133
      %s135 = ssub.s32 %s12, %s19
      %p136 = scmp.eq.s32.totalorder %s135, 0
      %s138 = sadd.s32 %s137, 1
      %s139 = scalar_select %p136, %s137, %s138
      %p142 = pneg %p136
      %p143 = scmp.eq.s32.totalorder %s12, 1
      %p144 = por %p142, %p143
      %p145 = scmp.ne.s32.totalorder %s137, %s140
      %p146 = scmp.eq.s32.totalorder %s12, 0
      %p147 = por %p145, %p146
      %p148 = scmp.ne.s32.totalorder %s137, %s140
      %p149 = scmp.eq.s32.totalorder %s17, 1
      %p150 = por %p148, %p149
      %p151 = scmp.ne.s32.totalorder %s140, %s141
      %p152 = scmp.eq.s32.totalorder %s17, 0
      %p153 = por %p151, %p152
      %p154 = scmp.ne.s32.totalorder %s140, %s141
      %p155 = scmp.eq.s32.totalorder %s18, 1
      %p156 = por %p154, %p155
      %p158 = scmp.ne.s32.totalorder %s141, %s157
      %p159 = scmp.eq.s32.totalorder %s18, 0
      %p160 = por %p158, %p159
      %p161 = scmp.le.s32.totalorder 1, %s12
      %p162 = scmp.lt.s32.totalorder %s12, 3
      %p163 = pnand %p161, %p162
      %p164 = pneg %p163
      // Predicated region
      $region9: #{tpu_custom_call.1} parent=5 // pred_check
        _
      $region10: #{tpu_custom_call.1} parent=5 // pred_check_branch
        %166 = sbr.rel (%p163) target = $region12
      $region11: #{tpu_custom_call.1} parent=5 // pred_region
        %s167 = ssub.s32 %s12, 1
        // Predicated region
        $region13: #{tpu_custom_call.1} parent=11 // pred_check
          %p168 = pneg %p85
        $region14: #{tpu_custom_call.1} parent=11 // pred_check_branch
          %170 = sbr.rel (%p168) target = $region16
        $region15: #{tpu_custom_call.1} parent=11 // pred_region
          %s172 = ssub.s32 16, 16
          %173 = vsyncadd [#allocation3], %s172
          %s175 = sshll.u32 %s2, 4
          %s176 = int_to_ptr.vmem [resolvable:$true] %s175
          %178 = dma.vmem_to_smem %s176, 16, [#allocation2], [#allocation3]
        $region16: #{tpu_custom_call.1} parent=11 // pred_fallthru
          _
        // Predicated region
        $region17: #{tpu_custom_call.1} parent=11 // pred_check
          %p179 = pneg %p106
        $region18: #{tpu_custom_call.1} parent=11 // pred_check_branch
          %181 = sbr.rel (%p179) target = $region20
        $region19: #{tpu_custom_call.1} parent=11 // pred_region
          _
        $region20: #{tpu_custom_call.1} parent=11 // pred_fallthru
          _
        // Predicated region
        $region21: #{tpu_custom_call.1} parent=11 // pred_check
          %p182 = pneg %p127
        $region22: #{tpu_custom_call.1} parent=11 // pred_check_branch
          %184 = sbr.rel (%p182) target = $region24
        $region23: #{tpu_custom_call.1} parent=11 // pred_region
          _
        $region24: #{tpu_custom_call.1} parent=11 // pred_fallthru
          _
      $region12: #{tpu_custom_call.1} parent=5 // pred_fallthru
        _
      %p185 = scmp.lt.s32.totalorder %s12, 2
      // Predicated region
      $region25: #{tpu_custom_call.1} parent=5 // pred_check
        %p186 = pneg %p185
      $region26: #{tpu_custom_call.1} parent=5 // pred_check_branch
        %188 = sbr.rel (%p186) target = $region28
      $region27: #{tpu_custom_call.1} parent=5 // pred_region
        // Predicated region
        $region29: #{tpu_custom_call.1} parent=27 // pred_check
          %p189 = pneg %p32
        $region30: #{tpu_custom_call.1} parent=27 // pred_check_branch
          %191 = sbr.rel (%p189) target = $region32
        $region31: #{tpu_custom_call.1} parent=27 // pred_region
          %s192 = smul.u32 4, %s12
          %p193 = scmp.lt.s32.totalorder %s192, 7
          %s194 = scalar_select %p193, %s192, 7
          %s195 = smul.addr %s194, 2
          %s196 = smul.addr %s195, 8
          %s197 = scalar_lea.vmem %s0, %s196
          %s198 = smul.u32 4, %s12
        $region32: #{tpu_custom_call.1} parent=27 // pred_fallthru
          _
        // Predicated region
        $region33: #{tpu_custom_call.1} parent=27 // pred_check
          %p199 = pneg %p58
        $region34: #{tpu_custom_call.1} parent=27 // pred_check_branch
          %201 = sbr.rel (%p199) target = $region36
        $region35: #{tpu_custom_call.1} parent=27 // pred_region
          %s202 = smul.u32 4, %s12
          %p203 = scmp.lt.s32.totalorder %s202, 7
          %s204 = scalar_select %p203, %s202, 7
          %s205 = smul.addr %s204, 2
          %s206 = smul.addr %s205, 8
          %s207 = scalar_lea.vmem %s1, %s206
          %s208 = smul.u32 4, %s12
        $region36: #{tpu_custom_call.1} parent=27 // pred_fallthru
          _
      $region28: #{tpu_custom_call.1} parent=5 // pred_fallthru
        _
      %p209 = scmp.le.s32.totalorder 1, %s12
      %p210 = scmp.lt.s32.totalorder %s12, 3
      %p211 = pnand %p209, %p210
      %p212 = pneg %p211
      // Predicated region
      $region37: #{tpu_custom_call.1} parent=5 // pred_check
        _
      $region38: #{tpu_custom_call.1} parent=5 // pred_check_branch
        %214 = sbr.rel (%p211) target = $region40
      $region39: #{tpu_custom_call.1} parent=5 // pred_region
        %s215 = ssub.s32 %s12, 1
        // Predicated region
        $region41: #{tpu_custom_call.1} parent=39 // pred_check
          %p216 = pneg %p85
        $region42: #{tpu_custom_call.1} parent=39 // pred_check_branch
          %218 = sbr.rel (%p216) target = $region44
        $region43: #{tpu_custom_call.1} parent=39 // pred_region
          %219 = dma.done [#allocation3], 16
        $region44: #{tpu_custom_call.1} parent=39 // pred_fallthru
          _
        %220 = sfence
        %s221 = smul.u32 4, %s17
        %p222 = scmp.lt.s32.totalorder %s221, 7
        %s223 = scalar_select %p222, %s221, 7
        %s224 = smul.addr %s223, 2
        %s225 = smul.addr %s224, 8
        %s226 = scalar_lea.vmem %s0, %s225
        %p227 = pneg %p38
        %p228 = pneg %p35
        %s229 = smul.u32 4, %s17
        %p230 = scmp.lt.s32.totalorder %s229, 7
        %s231 = scalar_select %p230, %s229, 7
        %s232 = smul.addr %s231, 2
        %s233 = smul.addr %s232, 8
        %s234 = scalar_lea.vmem %s1, %s233
        %p235 = pneg %p64
        %p236 = pneg %p61
        %p237 = pneg %p85
        %p238 = pneg %p82
        %p239 = pneg %p106
        %p240 = pneg %p103
        %p241 = pneg %p127
        %p242 = pneg %p124
        %p243 = pneg %p153
        %p244 = pneg %p150
        %s245 = smul.u32 4, %s17
        %p246 = scmp.lt.s32.totalorder %s245, 7
        %s247 = scalar_select %p246, %s245, 7
        %s248 = scalar_lea.vmem %s5, %s247
        %s249 = smul.u32 4, %s17
        %p250 = scmp.lt.s32.totalorder %s249, 7
        %s251 = scalar_select %p250, %s249, 7
        %s252 = smul.addr %s251, 2
        %s253 = smul.addr %s252, 8
        %s254 = scalar_lea.vmem %s0, %s253
        %s255 = smul.u32 4, %s17
        %s256 = smul.u32 4, %s17
        %p257 = scmp.lt.s32.totalorder %s256, 7
        %s258 = scalar_select %p257, %s256, 7
        %s259 = smul.addr %s258, 2
        %s260 = smul.addr %s259, 8
        %s261 = scalar_lea.vmem %s1, %s260
        %s262 = smul.u32 4, %s17
        %s263 = smul.u32 4, %s17
        %p264 = scmp.lt.s32.totalorder %s263, 7
        %s265 = scalar_select %p264, %s263, 7
        %s266 = scalar_lea.vmem %s5, %s265
        %s267 = smul.u32 4, %s17
        %v268 = vld [vmem:[%s254] sm:$0xff]
        %v269 = vld [vmem:[%s254 + $0x8] sm:$0xff]
        %v270 = vld [vmem:[%s254 + $0x10] sm:$0xff]
        %v271 = vld [vmem:[%s254 + $0x18] sm:$0xff]
        %v272 = vld [vmem:[%s254 + $0x20] sm:$0xff]
        %v273 = vld [vmem:[%s254 + $0x28] sm:$0xff]
        %v274 = vld [vmem:[%s254 + $0x30] sm:$0xff]
        %v275 = vld [vmem:[%s254 + $0x38] sm:$0xff]
        %v276 = vld [vmem:[%s261] sm:$0xff]
        %v277 = vld [vmem:[%s261 + $0x8] sm:$0xff]
        %v278 = vld [vmem:[%s261 + $0x10] sm:$0xff]
        %v279 = vld [vmem:[%s261 + $0x18] sm:$0xff]
        %v280 = vld [vmem:[%s261 + $0x20] sm:$0xff]
        %v281 = vld [vmem:[%s261 + $0x28] sm:$0xff]
        %v282 = vld [vmem:[%s261 + $0x30] sm:$0xff]
        %v283 = vld [vmem:[%s261 + $0x38] sm:$0xff]
        %s284 = sld [smem:[#allocation2 + $0x2]]
        %s285 = sld [smem:[#allocation2 + $0x1]]
        %v286 = vstv %s284
        %v287 = vstv %s285
        %vm288 = vcmask 130048
        %v290 = vsel %vm288, %v286, 0
        %292 = vmatprep.subr.mxu0 0.0
        %293 = vmatpush1.msra.mxu0 %v268
        %294 = vmatprep.subr.mxu0 0.0
        %295 = vmatpush1.msra.mxu0 %v269
        %296 = vmatprep.subr.mxu0 0.0
        %297 = vmatpush1.msra.mxu0 0.0
        %298 = vmatprep.subr.mxu0 0.0
        %299 = vmatpush1.msra.mxu0 0.0
        %300 = vmatprep.subr.mxu0 0.0
        %301 = vmatpush1.msra.mxu0 0.0
        %302 = vmatprep.subr.mxu0 0.0
        %303 = vmatpush1.msra.mxu0 0.0
        %304 = vmatprep.subr.mxu0 0.0
        %305 = vmatpush1.msra.mxu0 0.0
        %306 = vmatprep.subr.mxu0 0.0
        %307 = vmatpush1.msra.mxu0 0.0
        %308 = vmatprep.subr.mxu0 0.0
        %309 = vmatpush1.msra.mxu0 0.0
        %310 = vmatprep.subr.mxu0 0.0
        %311 = vmatpush1.msra.mxu0 0.0
        %312 = vmatprep.subr.mxu0 0.0
        %313 = vmatpush1.msra.mxu0 0.0
        %314 = vmatprep.subr.mxu0 0.0
        %315 = vmatpush1.msra.mxu0 0.0
        %316 = vmatprep.subr.mxu0 0.0
        %317 = vmatpush1.msra.mxu0 0.0
        %318 = vmatprep.subr.mxu0 0.0
        %319 = vmatpush1.msra.mxu0 0.0
        %320 = vmatprep.subr.mxu0 0.0
        %321 = vmatpush1.msra.mxu0 0.0
        %322 = vmatprep.subr.mxu0 0.0
        %323 = vmatpush1.msra.mxu0 0.0
        %324 = vmatprep.subr.mxu0 0.0
        %325 = vmatpush1.msra.mxu0 0.0
        %326 = vmatprep.subr.mxu0 0.0
        %327 = vmatpush1.msra.mxu0 0.0
        %328 = vmatprep.subr.mxu0 0.0
        %329 = vmatpush1.msra.mxu0 0.0
        %330 = vmatprep.subr.mxu0 0.0
        %331 = vmatpush1.msra.mxu0 0.0
        %332 = vmatprep.subr.mxu0 0.0
        %333 = vmatpush1.msra.mxu0 0.0
        %334 = vmatprep.subr.mxu0 0.0
        %335 = vmatpush1.msra.mxu0 0.0
        %336 = vmatprep.subr.mxu0 0.0
        %337 = vmatpush1.msra.mxu0 0.0
        %338 = vmatprep.subr.mxu0 0.0
        %339 = vmatpush1.msra.mxu0 0.0
        %340 = vmatprep.subr.mxu0 0.0
        %341 = vmatpush1.msra.mxu0 0.0
        %342 = vmatprep.subr.mxu0 0.0
        %343 = vmatpush1.msra.mxu0 0.0
        %344 = vmatprep.subr.mxu0 0.0
        %345 = vmatpush1.msra.mxu0 0.0
        %346 = vmatprep.subr.mxu0 0.0
        %347 = vmatpush1.msra.mxu0 0.0
        %348 = vmatprep.subr.mxu0 0.0
        %349 = vmatpush1.msra.mxu0 0.0
        %350 = vmatprep.subr.mxu0 0.0
        %351 = vmatpush1.msra.mxu0 0.0
        %352 = vmatprep.subr.mxu0 0.0
        %353 = vmatpush1.msra.mxu0 0.0
        %354 = vmatprep.subr.mxu0 0.0
        %355 = vmatpush1.msra.mxu0 0.0
        %356 = vmatprep.mubr.f32.mxu0 0.0
        %357 = vmatmul.mubr.f32.gmra.mrb[0].mxu0 %v290
        %v358 = vpop.f32.mrb[0].mxu0
        %v359 = vadd.f32 %v287, %v358
        %v360 = vpop.f32.mrb[0].mxu0
        %361 = vdwg.mxu0
        %362 = vmatprep.subr.mxu0 0.0
        %363 = vmatpush1.msra.mxu0 %v270
        %364 = vmatprep.subr.mxu0 0.0
        %365 = vmatpush1.msra.mxu0 %v271
        %366 = vmatprep.subr.mxu0 0.0
        %367 = vmatpush1.msra.mxu0 0.0
        %368 = vmatprep.subr.mxu0 0.0
        %369 = vmatpush1.msra.mxu0 0.0
        %370 = vmatprep.subr.mxu0 0.0
        %371 = vmatpush1.msra.mxu0 0.0
        %372 = vmatprep.subr.mxu0 0.0
        %373 = vmatpush1.msra.mxu0 0.0
        %374 = vmatprep.subr.mxu0 0.0
        %375 = vmatpush1.msra.mxu0 0.0
        %376 = vmatprep.subr.mxu0 0.0
        %377 = vmatpush1.msra.mxu0 0.0
        %378 = vmatprep.subr.mxu0 0.0
        %379 = vmatpush1.msra.mxu0 0.0
        %380 = vmatprep.subr.mxu0 0.0
        %381 = vmatpush1.msra.mxu0 0.0
        %382 = vmatprep.subr.mxu0 0.0
        %383 = vmatpush1.msra.mxu0 0.0
        %384 = vmatprep.subr.mxu0 0.0
        %385 = vmatpush1.msra.mxu0 0.0
        %386 = vmatprep.subr.mxu0 0.0
        %387 = vmatpush1.msra.mxu0 0.0
        %388 = vmatprep.subr.mxu0 0.0
        %389 = vmatpush1.msra.mxu0 0.0
        %390 = vmatprep.subr.mxu0 0.0
        %391 = vmatpush1.msra.mxu0 0.0
        %392 = vmatprep.subr.mxu0 0.0
        %393 = vmatpush1.msra.mxu0 0.0
        %394 = vmatprep.subr.mxu0 0.0
        %395 = vmatpush1.msra.mxu0 0.0
        %396 = vmatprep.subr.mxu0 0.0
        %397 = vmatpush1.msra.mxu0 0.0
        %398 = vmatprep.subr.mxu0 0.0
        %399 = vmatpush1.msra.mxu0 0.0
        %400 = vmatprep.subr.mxu0 0.0
        %401 = vmatpush1.msra.mxu0 0.0
        %402 = vmatprep.subr.mxu0 0.0
        %403 = vmatpush1.msra.mxu0 0.0
        %404 = vmatprep.subr.mxu0 0.0
        %405 = vmatpush1.msra.mxu0 0.0
        %406 = vmatprep.subr.mxu0 0.0
        %407 = vmatpush1.msra.mxu0 0.0
        %408 = vmatprep.subr.mxu0 0.0
        %409 = vmatpush1.msra.mxu0 0.0
        %410 = vmatprep.subr.mxu0 0.0
        %411 = vmatpush1.msra.mxu0 0.0
        %412 = vmatprep.subr.mxu0 0.0
        %413 = vmatpush1.msra.mxu0 0.0
        %414 = vmatprep.subr.mxu0 0.0
        %415 = vmatpush1.msra.mxu0 0.0
        %416 = vmatprep.subr.mxu0 0.0
        %417 = vmatpush1.msra.mxu0 0.0
        %418 = vmatprep.subr.mxu0 0.0
        %419 = vmatpush1.msra.mxu0 0.0
        %420 = vmatprep.subr.mxu0 0.0
        %421 = vmatpush1.msra.mxu0 0.0
        %422 = vmatprep.subr.mxu0 0.0
        %423 = vmatpush1.msra.mxu0 0.0
        %424 = vmatprep.subr.mxu0 0.0
        %425 = vmatpush1.msra.mxu0 0.0
        %426 = vmatprep.mubr.f32.mxu0 0.0
        %427 = vmatmul.mubr.f32.gmra.mrb[0].mxu0 %v290
        %v428 = vpop.f32.mrb[0].mxu0
        %v429 = vadd.f32 %v287, %v428
        %v430 = vpop.f32.mrb[0].mxu0
        %431 = vdwg.mxu0
        %432 = vmatprep.subr.mxu0 0.0
        %433 = vmatpush1.msra.mxu0 %v272
        %434 = vmatprep.subr.mxu0 0.0
        %435 = vmatpush1.msra.mxu0 %v273
        %436 = vmatprep.subr.mxu0 0.0
        %437 = vmatpush1.msra.mxu0 0.0
        %438 = vmatprep.subr.mxu0 0.0
        %439 = vmatpush1.msra.mxu0 0.0
        %440 = vmatprep.subr.mxu0 0.0
        %441 = vmatpush1.msra.mxu0 0.0
        %442 = vmatprep.subr.mxu0 0.0
        %443 = vmatpush1.msra.mxu0 0.0
        %444 = vmatprep.subr.mxu0 0.0
        %445 = vmatpush1.msra.mxu0 0.0
        %446 = vmatprep.subr.mxu0 0.0
        %447 = vmatpush1.msra.mxu0 0.0
        %448 = vmatprep.subr.mxu0 0.0
        %449 = vmatpush1.msra.mxu0 0.0
        %450 = vmatprep.subr.mxu0 0.0
        %451 = vmatpush1.msra.mxu0 0.0
        %452 = vmatprep.subr.mxu0 0.0
        %453 = vmatpush1.msra.mxu0 0.0
        %454 = vmatprep.subr.mxu0 0.0
        %455 = vmatpush1.msra.mxu0 0.0
        %456 = vmatprep.subr.mxu0 0.0
        %457 = vmatpush1.msra.mxu0 0.0
        %458 = vmatprep.subr.mxu0 0.0
        %459 = vmatpush1.msra.mxu0 0.0
        %460 = vmatprep.subr.mxu0 0.0
        %461 = vmatpush1.msra.mxu0 0.0
        %462 = vmatprep.subr.mxu0 0.0
        %463 = vmatpush1.msra.mxu0 0.0
        %464 = vmatprep.subr.mxu0 0.0
        %465 = vmatpush1.msra.mxu0 0.0
        %466 = vmatprep.subr.mxu0 0.0
        %467 = vmatpush1.msra.mxu0 0.0
        %468 = vmatprep.subr.mxu0 0.0
        %469 = vmatpush1.msra.mxu0 0.0
        %470 = vmatprep.subr.mxu0 0.0
        %471 = vmatpush1.msra.mxu0 0.0
        %472 = vmatprep.subr.mxu0 0.0
        %473 = vmatpush1.msra.mxu0 0.0
        %474 = vmatprep.subr.mxu0 0.0
        %475 = vmatpush1.msra.mxu0 0.0
        %476 = vmatprep.subr.mxu0 0.0
        %477 = vmatpush1.msra.mxu0 0.0
        %478 = vmatprep.subr.mxu0 0.0
        %479 = vmatpush1.msra.mxu0 0.0
        %480 = vmatprep.subr.mxu0 0.0
        %481 = vmatpush1.msra.mxu0 0.0
        %482 = vmatprep.subr.mxu0 0.0
        %483 = vmatpush1.msra.mxu0 0.0
        %484 = vmatprep.subr.mxu0 0.0
        %485 = vmatpush1.msra.mxu0 0.0
        %486 = vmatprep.subr.mxu0 0.0
        %487 = vmatpush1.msra.mxu0 0.0
        %488 = vmatprep.subr.mxu0 0.0
        %489 = vmatpush1.msra.mxu0 0.0
        %490 = vmatprep.subr.mxu0 0.0
        %491 = vmatpush1.msra.mxu0 0.0
        %492 = vmatprep.subr.mxu0 0.0
        %493 = vmatpush1.msra.mxu0 0.0
        %494 = vmatprep.subr.mxu0 0.0
        %495 = vmatpush1.msra.mxu0 0.0
        %496 = vmatprep.mubr.f32.mxu0 0.0
        %497 = vmatmul.mubr.f32.gmra.mrb[0].mxu0 %v290
        %v498 = vpop.f32.mrb[0].mxu0
        %v499 = vadd.f32 %v287, %v498
        %v500 = vpop.f32.mrb[0].mxu0
        %501 = vdwg.mxu0
        %502 = vmatprep.subr.mxu0 0.0
        %503 = vmatpush1.msra.mxu0 %v274
        %504 = vmatprep.subr.mxu0 0.0
        %505 = vmatpush1.msra.mxu0 %v275
        %506 = vmatprep.subr.mxu0 0.0
        %507 = vmatpush1.msra.mxu0 0.0
        %508 = vmatprep.subr.mxu0 0.0
        %509 = vmatpush1.msra.mxu0 0.0
        %510 = vmatprep.subr.mxu0 0.0
        %511 = vmatpush1.msra.mxu0 0.0
        %512 = vmatprep.subr.mxu0 0.0
        %513 = vmatpush1.msra.mxu0 0.0
        %514 = vmatprep.subr.mxu0 0.0
        %515 = vmatpush1.msra.mxu0 0.0
        %516 = vmatprep.subr.mxu0 0.0
        %517 = vmatpush1.msra.mxu0 0.0
        %518 = vmatprep.subr.mxu0 0.0
        %519 = vmatpush1.msra.mxu0 0.0
        %520 = vmatprep.subr.mxu0 0.0
        %521 = vmatpush1.msra.mxu0 0.0
        %522 = vmatprep.subr.mxu0 0.0
        %523 = vmatpush1.msra.mxu0 0.0
        %524 = vmatprep.subr.mxu0 0.0
        %525 = vmatpush1.msra.mxu0 0.0
        %526 = vmatprep.subr.mxu0 0.0
        %527 = vmatpush1.msra.mxu0 0.0
        %528 = vmatprep.subr.mxu0 0.0
        %529 = vmatpush1.msra.mxu0 0.0
        %530 = vmatprep.subr.mxu0 0.0
        %531 = vmatpush1.msra.mxu0 0.0
        %532 = vmatprep.subr.mxu0 0.0
        %533 = vmatpush1.msra.mxu0 0.0
        %534 = vmatprep.subr.mxu0 0.0
        %535 = vmatpush1.msra.mxu0 0.0
        %536 = vmatprep.subr.mxu0 0.0
        %537 = vmatpush1.msra.mxu0 0.0
        %538 = vmatprep.subr.mxu0 0.0
        %539 = vmatpush1.msra.mxu0 0.0
        %540 = vmatprep.subr.mxu0 0.0
        %541 = vmatpush1.msra.mxu0 0.0
        %542 = vmatprep.subr.mxu0 0.0
        %543 = vmatpush1.msra.mxu0 0.0
        %544 = vmatprep.subr.mxu0 0.0
        %545 = vmatpush1.msra.mxu0 0.0
        %546 = vmatprep.subr.mxu0 0.0
        %547 = vmatpush1.msra.mxu0 0.0
        %548 = vmatprep.subr.mxu0 0.0
        %549 = vmatpush1.msra.mxu0 0.0
        %550 = vmatprep.subr.mxu0 0.0
        %551 = vmatpush1.msra.mxu0 0.0
        %552 = vmatprep.subr.mxu0 0.0
        %553 = vmatpush1.msra.mxu0 0.0
        %554 = vmatprep.subr.mxu0 0.0
        %555 = vmatpush1.msra.mxu0 0.0
        %556 = vmatprep.subr.mxu0 0.0
        %557 = vmatpush1.msra.mxu0 0.0
        %558 = vmatprep.subr.mxu0 0.0
        %559 = vmatpush1.msra.mxu0 0.0
        %560 = vmatprep.subr.mxu0 0.0
        %561 = vmatpush1.msra.mxu0 0.0
        %562 = vmatprep.subr.mxu0 0.0
        %563 = vmatpush1.msra.mxu0 0.0
        %564 = vmatprep.subr.mxu0 0.0
        %565 = vmatpush1.msra.mxu0 0.0
        %566 = vmatprep.mubr.f32.mxu0 0.0
        %567 = vmatmul.mubr.f32.gmra.mrb[0].mxu0 %v290
        %v568 = vpop.f32.mrb[0].mxu0
        %v569 = vadd.f32 %v287, %v568
        %v570 = vpop.f32.mrb[0].mxu0
        %571 = vdwg.mxu0
        %s572 = sld [smem:[#allocation2]]
        %v573 = vstv %s572
        %v575 = vsel %vm288, %v359, 0
        %577 = vmatprep.subr.mxu0 0.0
        %578 = vmatpush1.msra.mxu0 %v268
        %579 = vmatprep.subr.mxu0 0.0
        %580 = vmatpush1.msra.mxu0 %v269
        %581 = vmatprep.subr.mxu0 0.0
        %582 = vmatpush1.msra.mxu0 0.0
        %583 = vmatprep.subr.mxu0 0.0
        %584 = vmatpush1.msra.mxu0 0.0
        %585 = vmatprep.subr.mxu0 0.0
        %586 = vmatpush1.msra.mxu0 0.0
        %587 = vmatprep.subr.mxu0 0.0
        %588 = vmatpush1.msra.mxu0 0.0
        %589 = vmatprep.subr.mxu0 0.0
        %590 = vmatpush1.msra.mxu0 0.0
        %591 = vmatprep.subr.mxu0 0.0
        %592 = vmatpush1.msra.mxu0 0.0
        %593 = vmatprep.subr.mxu0 0.0
        %594 = vmatpush1.msra.mxu0 0.0
        %595 = vmatprep.subr.mxu0 0.0
        %596 = vmatpush1.msra.mxu0 0.0
        %597 = vmatprep.subr.mxu0 0.0
        %598 = vmatpush1.msra.mxu0 0.0
        %599 = vmatprep.subr.mxu0 0.0
        %600 = vmatpush1.msra.mxu0 0.0
        %601 = vmatprep.subr.mxu0 0.0
        %602 = vmatpush1.msra.mxu0 0.0
        %603 = vmatprep.subr.mxu0 0.0
        %604 = vmatpush1.msra.mxu0 0.0
        %605 = vmatprep.subr.mxu0 0.0
        %606 = vmatpush1.msra.mxu0 0.0
        %607 = vmatprep.subr.mxu0 0.0
        %608 = vmatpush1.msra.mxu0 0.0
        %609 = vmatprep.subr.mxu0 0.0
        %610 = vmatpush1.msra.mxu0 0.0
        %611 = vmatprep.subr.mxu0 0.0
        %612 = vmatpush1.msra.mxu0 0.0
        %613 = vmatprep.subr.mxu0 0.0
        %614 = vmatpush1.msra.mxu0 0.0
        %615 = vmatprep.subr.mxu0 0.0
        %616 = vmatpush1.msra.mxu0 0.0
        %617 = vmatprep.subr.mxu0 0.0
        %618 = vmatpush1.msra.mxu0 0.0
        %619 = vmatprep.subr.mxu0 0.0
        %620 = vmatpush1.msra.mxu0 0.0
        %621 = vmatprep.subr.mxu0 0.0
        %622 = vmatpush1.msra.mxu0 0.0
        %623 = vmatprep.subr.mxu0 0.0
        %624 = vmatpush1.msra.mxu0 0.0
        %625 = vmatprep.subr.mxu0 0.0
        %626 = vmatpush1.msra.mxu0 0.0
        %627 = vmatprep.subr.mxu0 0.0
        %628 = vmatpush1.msra.mxu0 0.0
        %629 = vmatprep.subr.mxu0 0.0
        %630 = vmatpush1.msra.mxu0 0.0
        %631 = vmatprep.subr.mxu0 0.0
        %632 = vmatpush1.msra.mxu0 0.0
        %633 = vmatprep.subr.mxu0 0.0
        %634 = vmatpush1.msra.mxu0 0.0
        %635 = vmatprep.subr.mxu0 0.0
        %636 = vmatpush1.msra.mxu0 0.0
        %637 = vmatprep.subr.mxu0 0.0
        %638 = vmatpush1.msra.mxu0 0.0
        %639 = vmatprep.subr.mxu0 0.0
        %640 = vmatpush1.msra.mxu0 0.0
        %641 = vmatprep.mubr.f32.mxu0 0.0
        %642 = vmatmul.mubr.f32.gmra.mrb[0].mxu0 %v575
        %v643 = vpop.f32.mrb[0].mxu0
        %v644 = vadd.f32 %v573, %v643
        %v645 = vpop.f32.mrb[0].mxu0
        %646 = vdwg.mxu0
        %v648 = vsel %vm288, %v429, 0
        %650 = vmatprep.subr.mxu0 0.0
        %651 = vmatpush1.msra.mxu0 %v270
        %652 = vmatprep.subr.mxu0 0.0
        %653 = vmatpush1.msra.mxu0 %v271
        %654 = vmatprep.subr.mxu0 0.0
        %655 = vmatpush1.msra.mxu0 0.0
        %656 = vmatprep.subr.mxu0 0.0
        %657 = vmatpush1.msra.mxu0 0.0
        %658 = vmatprep.subr.mxu0 0.0
        %659 = vmatpush1.msra.mxu0 0.0
        %660 = vmatprep.subr.mxu0 0.0
        %661 = vmatpush1.msra.mxu0 0.0
        %662 = vmatprep.subr.mxu0 0.0
        %663 = vmatpush1.msra.mxu0 0.0
        %664 = vmatprep.subr.mxu0 0.0
        %665 = vmatpush1.msra.mxu0 0.0
        %666 = vmatprep.subr.mxu0 0.0
        %667 = vmatpush1.msra.mxu0 0.0
        %668 = vmatprep.subr.mxu0 0.0
        %669 = vmatpush1.msra.mxu0 0.0
        %670 = vmatprep.subr.mxu0 0.0
        %671 = vmatpush1.msra.mxu0 0.0
        %672 = vmatprep.subr.mxu0 0.0
        %673 = vmatpush1.msra.mxu0 0.0
        %674 = vmatprep.subr.mxu0 0.0
        %675 = vmatpush1.msra.mxu0 0.0
        %676 = vmatprep.subr.mxu0 0.0
        %677 = vmatpush1.msra.mxu0 0.0
        %678 = vmatprep.subr.mxu0 0.0
        %679 = vmatpush1.msra.mxu0 0.0
        %680 = vmatprep.subr.mxu0 0.0
        %681 = vmatpush1.msra.mxu0 0.0
        %682 = vmatprep.subr.mxu0 0.0
        %683 = vmatpush1.msra.mxu0 0.0
        %684 = vmatprep.subr.mxu0 0.0
        %685 = vmatpush1.msra.mxu0 0.0
        %686 = vmatprep.subr.mxu0 0.0
        %687 = vmatpush1.msra.mxu0 0.0
        %688 = vmatprep.subr.mxu0 0.0
        %689 = vmatpush1.msra.mxu0 0.0
        %690 = vmatprep.subr.mxu0 0.0
        %691 = vmatpush1.msra.mxu0 0.0
        %692 = vmatprep.subr.mxu0 0.0
        %693 = vmatpush1.msra.mxu0 0.0
        %694 = vmatprep.subr.mxu0 0.0
        %695 = vmatpush1.msra.mxu0 0.0
        %696 = vmatprep.subr.mxu0 0.0
        %697 = vmatpush1.msra.mxu0 0.0
        %698 = vmatprep.subr.mxu0 0.0
        %699 = vmatpush1.msra.mxu0 0.0
        %700 = vmatprep.subr.mxu0 0.0
        %701 = vmatpush1.msra.mxu0 0.0
        %702 = vmatprep.subr.mxu0 0.0
        %703 = vmatpush1.msra.mxu0 0.0
        %704 = vmatprep.subr.mxu0 0.0
        %705 = vmatpush1.msra.mxu0 0.0
        %706 = vmatprep.subr.mxu0 0.0
        %707 = vmatpush1.msra.mxu0 0.0
        %708 = vmatprep.subr.mxu0 0.0
        %709 = vmatpush1.msra.mxu0 0.0
        %710 = vmatprep.subr.mxu0 0.0
        %711 = vmatpush1.msra.mxu0 0.0
        %712 = vmatprep.subr.mxu0 0.0
        %713 = vmatpush1.msra.mxu0 0.0
        %714 = vmatprep.mubr.f32.mxu0 0.0
        %715 = vmatmul.mubr.f32.gmra.mrb[0].mxu0 %v648
        %v716 = vpop.f32.mrb[0].mxu0
        %v717 = vadd.f32 %v573, %v716
        %v718 = vpop.f32.mrb[0].mxu0
        %719 = vdwg.mxu0
        %v721 = vsel %vm288, %v499, 0
        %723 = vmatprep.subr.mxu0 0.0
        %724 = vmatpush1.msra.mxu0 %v272
        %725 = vmatprep.subr.mxu0 0.0
        %726 = vmatpush1.msra.mxu0 %v273
        %727 = vmatprep.subr.mxu0 0.0
        %728 = vmatpush1.msra.mxu0 0.0
        %729 = vmatprep.subr.mxu0 0.0
        %730 = vmatpush1.msra.mxu0 0.0
        %731 = vmatprep.subr.mxu0 0.0
        %732 = vmatpush1.msra.mxu0 0.0
        %733 = vmatprep.subr.mxu0 0.0
        %734 = vmatpush1.msra.mxu0 0.0
        %735 = vmatprep.subr.mxu0 0.0
        %736 = vmatpush1.msra.mxu0 0.0
        %737 = vmatprep.subr.mxu0 0.0
        %738 = vmatpush1.msra.mxu0 0.0
        %739 = vmatprep.subr.mxu0 0.0
        %740 = vmatpush1.msra.mxu0 0.0
        %741 = vmatprep.subr.mxu0 0.0
        %742 = vmatpush1.msra.mxu0 0.0
        %743 = vmatprep.subr.mxu0 0.0
        %744 = vmatpush1.msra.mxu0 0.0
        %745 = vmatprep.subr.mxu0 0.0
        %746 = vmatpush1.msra.mxu0 0.0
        %747 = vmatprep.subr.mxu0 0.0
        %748 = vmatpush1.msra.mxu0 0.0
        %749 = vmatprep.subr.mxu0 0.0
        %750 = vmatpush1.msra.mxu0 0.0
        %751 = vmatprep.subr.mxu0 0.0
        %752 = vmatpush1.msra.mxu0 0.0
        %753 = vmatprep.subr.mxu0 0.0
        %754 = vmatpush1.msra.mxu0 0.0
        %755 = vmatprep.subr.mxu0 0.0
        %756 = vmatpush1.msra.mxu0 0.0
        %757 = vmatprep.subr.mxu0 0.0
        %758 = vmatpush1.msra.mxu0 0.0
        %759 = vmatprep.subr.mxu0 0.0
        %760 = vmatpush1.msra.mxu0 0.0
        %761 = vmatprep.subr.mxu0 0.0
        %762 = vmatpush1.msra.mxu0 0.0
        %763 = vmatprep.subr.mxu0 0.0
        %764 = vmatpush1.msra.mxu0 0.0
        %765 = vmatprep.subr.mxu0 0.0
        %766 = vmatpush1.msra.mxu0 0.0
        %767 = vmatprep.subr.mxu0 0.0
        %768 = vmatpush1.msra.mxu0 0.0
        %769 = vmatprep.subr.mxu0 0.0
        %770 = vmatpush1.msra.mxu0 0.0
        %771 = vmatprep.subr.mxu0 0.0
        %772 = vmatpush1.msra.mxu0 0.0
        %773 = vmatprep.subr.mxu0 0.0
        %774 = vmatpush1.msra.mxu0 0.0
        %775 = vmatprep.subr.mxu0 0.0
        %776 = vmatpush1.msra.mxu0 0.0
        %777 = vmatprep.subr.mxu0 0.0
        %778 = vmatpush1.msra.mxu0 0.0
        %779 = vmatprep.subr.mxu0 0.0
        %780 = vmatpush1.msra.mxu0 0.0
        %781 = vmatprep.subr.mxu0 0.0
        %782 = vmatpush1.msra.mxu0 0.0
        %783 = vmatprep.subr.mxu0 0.0
        %784 = vmatpush1.msra.mxu0 0.0
        %785 = vmatprep.subr.mxu0 0.0
        %786 = vmatpush1.msra.mxu0 0.0
        %787 = vmatprep.mubr.f32.mxu0 0.0
        %788 = vmatmul.mubr.f32.gmra.mrb[0].mxu0 %v721
        %v789 = vpop.f32.mrb[0].mxu0
        %v790 = vadd.f32 %v573, %v789
        %v791 = vpop.f32.mrb[0].mxu0
        %792 = vdwg.mxu0
        %v794 = vsel %vm288, %v569, 0
        %796 = vmatprep.subr.mxu0 0.0
        %797 = vmatpush1.msra.mxu0 %v274
        %798 = vmatprep.subr.mxu0 0.0
        %799 = vmatpush1.msra.mxu0 %v275
        %800 = vmatprep.subr.mxu0 0.0
        %801 = vmatpush1.msra.mxu0 0.0
        %802 = vmatprep.subr.mxu0 0.0
        %803 = vmatpush1.msra.mxu0 0.0
        %804 = vmatprep.subr.mxu0 0.0
        %805 = vmatpush1.msra.mxu0 0.0
        %806 = vmatprep.subr.mxu0 0.0
        %807 = vmatpush1.msra.mxu0 0.0
        %808 = vmatprep.subr.mxu0 0.0
        %809 = vmatpush1.msra.mxu0 0.0
        %810 = vmatprep.subr.mxu0 0.0
        %811 = vmatpush1.msra.mxu0 0.0
        %812 = vmatprep.subr.mxu0 0.0
        %813 = vmatpush1.msra.mxu0 0.0
        %814 = vmatprep.subr.mxu0 0.0
        %815 = vmatpush1.msra.mxu0 0.0
        %816 = vmatprep.subr.mxu0 0.0
        %817 = vmatpush1.msra.mxu0 0.0
        %818 = vmatprep.subr.mxu0 0.0
        %819 = vmatpush1.msra.mxu0 0.0
        %820 = vmatprep.subr.mxu0 0.0
        %821 = vmatpush1.msra.mxu0 0.0
        %822 = vmatprep.subr.mxu0 0.0
        %823 = vmatpush1.msra.mxu0 0.0
        %824 = vmatprep.subr.mxu0 0.0
        %825 = vmatpush1.msra.mxu0 0.0
        %826 = vmatprep.subr.mxu0 0.0
        %827 = vmatpush1.msra.mxu0 0.0
        %828 = vmatprep.subr.mxu0 0.0
        %829 = vmatpush1.msra.mxu0 0.0
        %830 = vmatprep.subr.mxu0 0.0
        %831 = vmatpush1.msra.mxu0 0.0
        %832 = vmatprep.subr.mxu0 0.0
        %833 = vmatpush1.msra.mxu0 0.0
        %834 = vmatprep.subr.mxu0 0.0
        %835 = vmatpush1.msra.mxu0 0.0
        %836 = vmatprep.subr.mxu0 0.0
        %837 = vmatpush1.msra.mxu0 0.0
        %838 = vmatprep.subr.mxu0 0.0
        %839 = vmatpush1.msra.mxu0 0.0
        %840 = vmatprep.subr.mxu0 0.0
        %841 = vmatpush1.msra.mxu0 0.0
        %842 = vmatprep.subr.mxu0 0.0
        %843 = vmatpush1.msra.mxu0 0.0
        %844 = vmatprep.subr.mxu0 0.0
        %845 = vmatpush1.msra.mxu0 0.0
        %846 = vmatprep.subr.mxu0 0.0
        %847 = vmatpush1.msra.mxu0 0.0
        %848 = vmatprep.subr.mxu0 0.0
        %849 = vmatpush1.msra.mxu0 0.0
        %850 = vmatprep.subr.mxu0 0.0
        %851 = vmatpush1.msra.mxu0 0.0
        %852 = vmatprep.subr.mxu0 0.0
        %853 = vmatpush1.msra.mxu0 0.0
        %854 = vmatprep.subr.mxu0 0.0
        %855 = vmatpush1.msra.mxu0 0.0
        %856 = vmatprep.subr.mxu0 0.0
        %857 = vmatpush1.msra.mxu0 0.0
        %858 = vmatprep.subr.mxu0 0.0
        %859 = vmatpush1.msra.mxu0 0.0
        %860 = vmatprep.mubr.f32.mxu0 0.0
        %861 = vmatmul.mubr.f32.gmra.mrb[0].mxu0 %v794
        %v862 = vpop.f32.mrb[0].mxu0
        %v863 = vadd.f32 %v573, %v862
        %v864 = vpop.f32.mrb[0].mxu0
        %865 = vdwg.mxu0
        %v867 = vsel %vm288, %v644, 0
        %869 = vmatprep.subr.mxu0 0.0
        %870 = vmatpush1.msra.mxu0 %v276
        %871 = vmatprep.subr.mxu0 0.0
        %872 = vmatpush1.msra.mxu0 %v277
        %873 = vmatprep.subr.mxu0 0.0
        %874 = vmatpush1.msra.mxu0 0.0
        %875 = vmatprep.subr.mxu0 0.0
        %876 = vmatpush1.msra.mxu0 0.0
        %877 = vmatprep.subr.mxu0 0.0
        %878 = vmatpush1.msra.mxu0 0.0
        %879 = vmatprep.subr.mxu0 0.0
        %880 = vmatpush1.msra.mxu0 0.0
        %881 = vmatprep.subr.mxu0 0.0
        %882 = vmatpush1.msra.mxu0 0.0
        %883 = vmatprep.subr.mxu0 0.0
        %884 = vmatpush1.msra.mxu0 0.0
        %885 = vmatprep.subr.mxu0 0.0
        %886 = vmatpush1.msra.mxu0 0.0
        %887 = vmatprep.subr.mxu0 0.0
        %888 = vmatpush1.msra.mxu0 0.0
        %889 = vmatprep.subr.mxu0 0.0
        %890 = vmatpush1.msra.mxu0 0.0
        %891 = vmatprep.subr.mxu0 0.0
        %892 = vmatpush1.msra.mxu0 0.0
        %893 = vmatprep.subr.mxu0 0.0
        %894 = vmatpush1.msra.mxu0 0.0
        %895 = vmatprep.subr.mxu0 0.0
        %896 = vmatpush1.msra.mxu0 0.0
        %897 = vmatprep.subr.mxu0 0.0
        %898 = vmatpush1.msra.mxu0 0.0
        %899 = vmatprep.subr.mxu0 0.0
        %900 = vmatpush1.msra.mxu0 0.0
        %901 = vmatprep.subr.mxu0 0.0
        %902 = vmatpush1.msra.mxu0 0.0
        %903 = vmatprep.subr.mxu0 0.0
        %904 = vmatpush1.msra.mxu0 0.0
        %905 = vmatprep.subr.mxu0 0.0
        %906 = vmatpush1.msra.mxu0 0.0
        %907 = vmatprep.subr.mxu0 0.0
        %908 = vmatpush1.msra.mxu0 0.0
        %909 = vmatprep.subr.mxu0 0.0
        %910 = vmatpush1.msra.mxu0 0.0
        %911 = vmatprep.subr.mxu0 0.0
        %912 = vmatpush1.msra.mxu0 0.0
        %913 = vmatprep.subr.mxu0 0.0
        %914 = vmatpush1.msra.mxu0 0.0
        %915 = vmatprep.subr.mxu0 0.0
        %916 = vmatpush1.msra.mxu0 0.0
        %917 = vmatprep.subr.mxu0 0.0
        %918 = vmatpush1.msra.mxu0 0.0
        %919 = vmatprep.subr.mxu0 0.0
        %920 = vmatpush1.msra.mxu0 0.0
        %921 = vmatprep.subr.mxu0 0.0
        %922 = vmatpush1.msra.mxu0 0.0
        %923 = vmatprep.subr.mxu0 0.0
        %924 = vmatpush1.msra.mxu0 0.0
        %925 = vmatprep.subr.mxu0 0.0
        %926 = vmatpush1.msra.mxu0 0.0
        %927 = vmatprep.subr.mxu0 0.0
        %928 = vmatpush1.msra.mxu0 0.0
        %929 = vmatprep.subr.mxu0 0.0
        %930 = vmatpush1.msra.mxu0 0.0
        %931 = vmatprep.subr.mxu0 0.0
        %932 = vmatpush1.msra.mxu0 0.0
        %933 = vmatprep.mubr.f32.mxu0 0.0
        %934 = vmatmul.mubr.f32.gmra.mrb[0].mxu0 %v867
        %v935 = vpop.f32.mrb[0].mxu0
        %v936 = vadd.f32 0.0, %v935
        %v937 = vpop.f32.mrb[0].mxu0
        %938 = vdwg.mxu0
        %v940 = vsel %vm288, %v717, 0
        %942 = vmatprep.subr.mxu0 0.0
        %943 = vmatpush1.msra.mxu0 %v278
        %944 = vmatprep.subr.mxu0 0.0
        %945 = vmatpush1.msra.mxu0 %v279
        %946 = vmatprep.subr.mxu0 0.0
        %947 = vmatpush1.msra.mxu0 0.0
        %948 = vmatprep.subr.mxu0 0.0
        %949 = vmatpush1.msra.mxu0 0.0
        %950 = vmatprep.subr.mxu0 0.0
        %951 = vmatpush1.msra.mxu0 0.0
        %952 = vmatprep.subr.mxu0 0.0
        %953 = vmatpush1.msra.mxu0 0.0
        %954 = vmatprep.subr.mxu0 0.0
        %955 = vmatpush1.msra.mxu0 0.0
        %956 = vmatprep.subr.mxu0 0.0
        %957 = vmatpush1.msra.mxu0 0.0
        %958 = vmatprep.subr.mxu0 0.0
        %959 = vmatpush1.msra.mxu0 0.0
        %960 = vmatprep.subr.mxu0 0.0
        %961 = vmatpush1.msra.mxu0 0.0
        %962 = vmatprep.subr.mxu0 0.0
        %963 = vmatpush1.msra.mxu0 0.0
        %964 = vmatprep.subr.mxu0 0.0
        %965 = vmatpush1.msra.mxu0 0.0
        %966 = vmatprep.subr.mxu0 0.0
        %967 = vmatpush1.msra.mxu0 0.0
        %968 = vmatprep.subr.mxu0 0.0
        %969 = vmatpush1.msra.mxu0 0.0
        %970 = vmatprep.subr.mxu0 0.0
        %971 = vmatpush1.msra.mxu0 0.0
        %972 = vmatprep.subr.mxu0 0.0
        %973 = vmatpush1.msra.mxu0 0.0
        %974 = vmatprep.subr.mxu0 0.0
        %975 = vmatpush1.msra.mxu0 0.0
        %976 = vmatprep.subr.mxu0 0.0
        %977 = vmatpush1.msra.mxu0 0.0
        %978 = vmatprep.subr.mxu0 0.0
        %979 = vmatpush1.msra.mxu0 0.0
        %980 = vmatprep.subr.mxu0 0.0
        %981 = vmatpush1.msra.mxu0 0.0
        %982 = vmatprep.subr.mxu0 0.0
        %983 = vmatpush1.msra.mxu0 0.0
        %984 = vmatprep.subr.mxu0 0.0
        %985 = vmatpush1.msra.mxu0 0.0
        %986 = vmatprep.subr.mxu0 0.0
        %987 = vmatpush1.msra.mxu0 0.0
        %988 = vmatprep.subr.mxu0 0.0
        %989 = vmatpush1.msra.mxu0 0.0
        %990 = vmatprep.subr.mxu0 0.0
        %991 = vmatpush1.msra.mxu0 0.0
        %992 = vmatprep.subr.mxu0 0.0
        %993 = vmatpush1.msra.mxu0 0.0
        %994 = vmatprep.subr.mxu0 0.0
        %995 = vmatpush1.msra.mxu0 0.0
        %996 = vmatprep.subr.mxu0 0.0
        %997 = vmatpush1.msra.mxu0 0.0
        %998 = vmatprep.subr.mxu0 0.0
        %999 = vmatpush1.msra.mxu0 0.0
        %1000 = vmatprep.subr.mxu0 0.0
        %1001 = vmatpush1.msra.mxu0 0.0
        %1002 = vmatprep.subr.mxu0 0.0
        %1003 = vmatpush1.msra.mxu0 0.0
        %1004 = vmatprep.subr.mxu0 0.0
        %1005 = vmatpush1.msra.mxu0 0.0
        %1006 = vmatprep.mubr.f32.mxu0 0.0
        %1007 = vmatmul.mubr.f32.gmra.mrb[0].mxu0 %v940
        %v1008 = vpop.f32.mrb[0].mxu0
        %v1009 = vadd.f32 0.0, %v1008
        %v1010 = vpop.f32.mrb[0].mxu0
        %1011 = vdwg.mxu0
        %v1013 = vsel %vm288, %v790, 0
        %1015 = vmatprep.subr.mxu0 0.0
        %1016 = vmatpush1.msra.mxu0 %v280
        %1017 = vmatprep.subr.mxu0 0.0
        %1018 = vmatpush1.msra.mxu0 %v281
        %1019 = vmatprep.subr.mxu0 0.0
        %1020 = vmatpush1.msra.mxu0 0.0
        %1021 = vmatprep.subr.mxu0 0.0
        %1022 = vmatpush1.msra.mxu0 0.0
        %1023 = vmatprep.subr.mxu0 0.0
        %1024 = vmatpush1.msra.mxu0 0.0
        %1025 = vmatprep.subr.mxu0 0.0
        %1026 = vmatpush1.msra.mxu0 0.0
        %1027 = vmatprep.subr.mxu0 0.0
        %1028 = vmatpush1.msra.mxu0 0.0
        %1029 = vmatprep.subr.mxu0 0.0
        %1030 = vmatpush1.msra.mxu0 0.0
        %1031 = vmatprep.subr.mxu0 0.0
        %1032 = vmatpush1.msra.mxu0 0.0
        %1033 = vmatprep.subr.mxu0 0.0
        %1034 = vmatpush1.msra.mxu0 0.0
        %1035 = vmatprep.subr.mxu0 0.0
        %1036 = vmatpush1.msra.mxu0 0.0
        %1037 = vmatprep.subr.mxu0 0.0
        %1038 = vmatpush1.msra.mxu0 0.0
        %1039 = vmatprep.subr.mxu0 0.0
        %1040 = vmatpush1.msra.mxu0 0.0
        %1041 = vmatprep.subr.mxu0 0.0
        %1042 = vmatpush1.msra.mxu0 0.0
        %1043 = vmatprep.subr.mxu0 0.0
        %1044 = vmatpush1.msra.mxu0 0.0
        %1045 = vmatprep.subr.mxu0 0.0
        %1046 = vmatpush1.msra.mxu0 0.0
        %1047 = vmatprep.subr.mxu0 0.0
        %1048 = vmatpush1.msra.mxu0 0.0
        %1049 = vmatprep.subr.mxu0 0.0
        %1050 = vmatpush1.msra.mxu0 0.0
        %1051 = vmatprep.subr.mxu0 0.0
        %1052 = vmatpush1.msra.mxu0 0.0
        %1053 = vmatprep.subr.mxu0 0.0
        %1054 = vmatpush1.msra.mxu0 0.0
        %1055 = vmatprep.subr.mxu0 0.0
        %1056 = vmatpush1.msra.mxu0 0.0
        %1057 = vmatprep.subr.mxu0 0.0
        %1058 = vmatpush1.msra.mxu0 0.0
        %1059 = vmatprep.subr.mxu0 0.0
        %1060 = vmatpush1.msra.mxu0 0.0
        %1061 = vmatprep.subr.mxu0 0.0
        %1062 = vmatpush1.msra.mxu0 0.0
        %1063 = vmatprep.subr.mxu0 0.0
        %1064 = vmatpush1.msra.mxu0 0.0
        %1065 = vmatprep.subr.mxu0 0.0
        %1066 = vmatpush1.msra.mxu0 0.0
        %1067 = vmatprep.subr.mxu0 0.0
        %1068 = vmatpush1.msra.mxu0 0.0
        %1069 = vmatprep.subr.mxu0 0.0
        %1070 = vmatpush1.msra.mxu0 0.0
        %1071 = vmatprep.subr.mxu0 0.0
        %1072 = vmatpush1.msra.mxu0 0.0
        %1073 = vmatprep.subr.mxu0 0.0
        %1074 = vmatpush1.msra.mxu0 0.0
        %1075 = vmatprep.subr.mxu0 0.0
        %1076 = vmatpush1.msra.mxu0 0.0
        %1077 = vmatprep.subr.mxu0 0.0
        %1078 = vmatpush1.msra.mxu0 0.0
        %1079 = vmatprep.mubr.f32.mxu0 0.0
        %1080 = vmatmul.mubr.f32.gmra.mrb[0].mxu0 %v1013
        %v1081 = vpop.f32.mrb[0].mxu0
        %v1082 = vadd.f32 0.0, %v1081
        %v1083 = vpop.f32.mrb[0].mxu0
        %1084 = vdwg.mxu0
        %v1086 = vsel %vm288, %v863, 0
        %1088 = vmatprep.subr.mxu0 0.0
        %1089 = vmatpush1.msra.mxu0 %v282
        %1090 = vmatprep.subr.mxu0 0.0
        %1091 = vmatpush1.msra.mxu0 %v283
        %1092 = vmatprep.subr.mxu0 0.0
        %1093 = vmatpush1.msra.mxu0 0.0
        %1094 = vmatprep.subr.mxu0 0.0
        %1095 = vmatpush1.msra.mxu0 0.0
        %1096 = vmatprep.subr.mxu0 0.0
        %1097 = vmatpush1.msra.mxu0 0.0
        %1098 = vmatprep.subr.mxu0 0.0
        %1099 = vmatpush1.msra.mxu0 0.0
        %1100 = vmatprep.subr.mxu0 0.0
        %1101 = vmatpush1.msra.mxu0 0.0
        %1102 = vmatprep.subr.mxu0 0.0
        %1103 = vmatpush1.msra.mxu0 0.0
        %1104 = vmatprep.subr.mxu0 0.0
        %1105 = vmatpush1.msra.mxu0 0.0
        %1106 = vmatprep.subr.mxu0 0.0
        %1107 = vmatpush1.msra.mxu0 0.0
        %1108 = vmatprep.subr.mxu0 0.0
        %1109 = vmatpush1.msra.mxu0 0.0
        %1110 = vmatprep.subr.mxu0 0.0
        %1111 = vmatpush1.msra.mxu0 0.0
        %1112 = vmatprep.subr.mxu0 0.0
        %1113 = vmatpush1.msra.mxu0 0.0
        %1114 = vmatprep.subr.mxu0 0.0
        %1115 = vmatpush1.msra.mxu0 0.0
        %1116 = vmatprep.subr.mxu0 0.0
        %1117 = vmatpush1.msra.mxu0 0.0
        %1118 = vmatprep.subr.mxu0 0.0
        %1119 = vmatpush1.msra.mxu0 0.0
        %1120 = vmatprep.subr.mxu0 0.0
        %1121 = vmatpush1.msra.mxu0 0.0
        %1122 = vmatprep.subr.mxu0 0.0
        %1123 = vmatpush1.msra.mxu0 0.0
        %1124 = vmatprep.subr.mxu0 0.0
        %1125 = vmatpush1.msra.mxu0 0.0
        %1126 = vmatprep.subr.mxu0 0.0
        %1127 = vmatpush1.msra.mxu0 0.0
        %1128 = vmatprep.subr.mxu0 0.0
        %1129 = vmatpush1.msra.mxu0 0.0
        %1130 = vmatprep.subr.mxu0 0.0
        %1131 = vmatpush1.msra.mxu0 0.0
        %1132 = vmatprep.subr.mxu0 0.0
        %1133 = vmatpush1.msra.mxu0 0.0
        %1134 = vmatprep.subr.mxu0 0.0
        %1135 = vmatpush1.msra.mxu0 0.0
        %1136 = vmatprep.subr.mxu0 0.0
        %1137 = vmatpush1.msra.mxu0 0.0
        %1138 = vmatprep.subr.mxu0 0.0
        %1139 = vmatpush1.msra.mxu0 0.0
        %1140 = vmatprep.subr.mxu0 0.0
        %1141 = vmatpush1.msra.mxu0 0.0
        %1142 = vmatprep.subr.mxu0 0.0
        %1143 = vmatpush1.msra.mxu0 0.0
        %1144 = vmatprep.subr.mxu0 0.0
        %1145 = vmatpush1.msra.mxu0 0.0
        %1146 = vmatprep.subr.mxu0 0.0
        %1147 = vmatpush1.msra.mxu0 0.0
        %1148 = vmatprep.subr.mxu0 0.0
        %1149 = vmatpush1.msra.mxu0 0.0
        %1150 = vmatprep.subr.mxu0 0.0
        %1151 = vmatpush1.msra.mxu0 0.0
        %1152 = vmatprep.mubr.f32.mxu0 0.0
        %1153 = vmatmul.mubr.f32.gmra.mrb[0].mxu0 %v1086
        %v1154 = vpop.f32.mrb[0].mxu0
        %v1155 = vadd.f32 0.0, %v1154
        %v1156 = vpop.f32.mrb[0].mxu0
        %1157 = vdwg.mxu0
        %v1158 = vld [vmem:[%s3] sm:$0xff]
        %v1159 = vld [vmem:[%s4] sm:$0x1]
        %vm1160 = vcmask 64512
        %v1162 = vsel %vm1160, %v936, 0
        %1164 = vmatprep.subr.mxu0 0.0
        %1165 = vmatpush1.msra.mxu0 %v1158
        %1166 = vmatprep.subr.mxu0 0.0
        %1167 = vmatpush1.msra.mxu0 0.0
        %1168 = vmatprep.subr.mxu0 0.0
        %1169 = vmatpush1.msra.mxu0 0.0
        %1170 = vmatprep.subr.mxu0 0.0
        %1171 = vmatpush1.msra.mxu0 0.0
        %1172 = vmatprep.subr.mxu0 0.0
        %1173 = vmatpush1.msra.mxu0 0.0
        %1174 = vmatprep.subr.mxu0 0.0
        %1175 = vmatpush1.msra.mxu0 0.0
        %1176 = vmatprep.subr.mxu0 0.0
        %1177 = vmatpush1.msra.mxu0 0.0
        %1178 = vmatprep.subr.mxu0 0.0
        %1179 = vmatpush1.msra.mxu0 0.0
        %1180 = vmatprep.subr.mxu0 0.0
        %1181 = vmatpush1.msra.mxu0 0.0
        %1182 = vmatprep.subr.mxu0 0.0
        %1183 = vmatpush1.msra.mxu0 0.0
        %1184 = vmatprep.subr.mxu0 0.0
        %1185 = vmatpush1.msra.mxu0 0.0
        %1186 = vmatprep.subr.mxu0 0.0
        %1187 = vmatpush1.msra.mxu0 0.0
        %1188 = vmatprep.subr.mxu0 0.0
        %1189 = vmatpush1.msra.mxu0 0.0
        %1190 = vmatprep.subr.mxu0 0.0
        %1191 = vmatpush1.msra.mxu0 0.0
        %1192 = vmatprep.subr.mxu0 0.0
        %1193 = vmatpush1.msra.mxu0 0.0
        %1194 = vmatprep.subr.mxu0 0.0
        %1195 = vmatpush1.msra.mxu0 0.0
        %1196 = vmatprep.subr.mxu0 0.0
        %1197 = vmatpush1.msra.mxu0 0.0
        %1198 = vmatprep.subr.mxu0 0.0
        %1199 = vmatpush1.msra.mxu0 0.0
        %1200 = vmatprep.subr.mxu0 0.0
        %1201 = vmatpush1.msra.mxu0 0.0
        %1202 = vmatprep.subr.mxu0 0.0
        %1203 = vmatpush1.msra.mxu0 0.0
        %1204 = vmatprep.subr.mxu0 0.0
        %1205 = vmatpush1.msra.mxu0 0.0
        %1206 = vmatprep.subr.mxu0 0.0
        %1207 = vmatpush1.msra.mxu0 0.0
        %1208 = vmatprep.subr.mxu0 0.0
        %1209 = vmatpush1.msra.mxu0 0.0
        %1210 = vmatprep.subr.mxu0 0.0
        %1211 = vmatpush1.msra.mxu0 0.0
        %1212 = vmatprep.subr.mxu0 0.0
        %1213 = vmatpush1.msra.mxu0 0.0
        %1214 = vmatprep.subr.mxu0 0.0
        %1215 = vmatpush1.msra.mxu0 0.0
        %1216 = vmatprep.subr.mxu0 0.0
        %1217 = vmatpush1.msra.mxu0 0.0
        %1218 = vmatprep.subr.mxu0 0.0
        %1219 = vmatpush1.msra.mxu0 0.0
        %1220 = vmatprep.subr.mxu0 0.0
        %1221 = vmatpush1.msra.mxu0 0.0
        %1222 = vmatprep.subr.mxu0 0.0
        %1223 = vmatpush1.msra.mxu0 0.0
        %1224 = vmatprep.subr.mxu0 0.0
        %1225 = vmatpush1.msra.mxu0 0.0
        %1226 = vmatprep.subr.mxu0 0.0
        %1227 = vmatpush1.msra.mxu0 0.0
        %1228 = vmatprep.mubr.f32.mxu0 0.0
        %1229 = vmatmul.mubr.f32.gmra.mrb[0].mxu0 %v1162
        %v1230 = vpop.f32.mrb[0].mxu0
        %v1231 = vadd.f32 %v1159, %v1230
        %v1232 = vpop.f32.mrb[0].mxu0
        %1233 = vdwg.mxu0
        %v1235 = vsel %vm1160, %v1009, 0
        %1237 = vmatprep.subr.mxu0 0.0
        %1238 = vmatpush1.msra.mxu0 %v1158
        %1239 = vmatprep.subr.mxu0 0.0
        %1240 = vmatpush1.msra.mxu0 0.0
        %1241 = vmatprep.subr.mxu0 0.0
        %1242 = vmatpush1.msra.mxu0 0.0
        %1243 = vmatprep.subr.mxu0 0.0
        %1244 = vmatpush1.msra.mxu0 0.0
        %1245 = vmatprep.subr.mxu0 0.0
        %1246 = vmatpush1.msra.mxu0 0.0
        %1247 = vmatprep.subr.mxu0 0.0
        %1248 = vmatpush1.msra.mxu0 0.0
        %1249 = vmatprep.subr.mxu0 0.0
        %1250 = vmatpush1.msra.mxu0 0.0
        %1251 = vmatprep.subr.mxu0 0.0
        %1252 = vmatpush1.msra.mxu0 0.0
        %1253 = vmatprep.subr.mxu0 0.0
        %1254 = vmatpush1.msra.mxu0 0.0
        %1255 = vmatprep.subr.mxu0 0.0
        %1256 = vmatpush1.msra.mxu0 0.0
        %1257 = vmatprep.subr.mxu0 0.0
        %1258 = vmatpush1.msra.mxu0 0.0
        %1259 = vmatprep.subr.mxu0 0.0
        %1260 = vmatpush1.msra.mxu0 0.0
        %1261 = vmatprep.subr.mxu0 0.0
        %1262 = vmatpush1.msra.mxu0 0.0
        %1263 = vmatprep.subr.mxu0 0.0
        %1264 = vmatpush1.msra.mxu0 0.0
        %1265 = vmatprep.subr.mxu0 0.0
        %1266 = vmatpush1.msra.mxu0 0.0
        %1267 = vmatprep.subr.mxu0 0.0
        %1268 = vmatpush1.msra.mxu0 0.0
        %1269 = vmatprep.subr.mxu0 0.0
        %1270 = vmatpush1.msra.mxu0 0.0
        %1271 = vmatprep.subr.mxu0 0.0
        %1272 = vmatpush1.msra.mxu0 0.0
        %1273 = vmatprep.subr.mxu0 0.0
        %1274 = vmatpush1.msra.mxu0 0.0
        %1275 = vmatprep.subr.mxu0 0.0
        %1276 = vmatpush1.msra.mxu0 0.0
        %1277 = vmatprep.subr.mxu0 0.0
        %1278 = vmatpush1.msra.mxu0 0.0
        %1279 = vmatprep.subr.mxu0 0.0
        %1280 = vmatpush1.msra.mxu0 0.0
        %1281 = vmatprep.subr.mxu0 0.0
        %1282 = vmatpush1.msra.mxu0 0.0
        %1283 = vmatprep.subr.mxu0 0.0
        %1284 = vmatpush1.msra.mxu0 0.0
        %1285 = vmatprep.subr.mxu0 0.0
        %1286 = vmatpush1.msra.mxu0 0.0
        %1287 = vmatprep.subr.mxu0 0.0
        %1288 = vmatpush1.msra.mxu0 0.0
        %1289 = vmatprep.subr.mxu0 0.0
        %1290 = vmatpush1.msra.mxu0 0.0
        %1291 = vmatprep.subr.mxu0 0.0
        %1292 = vmatpush1.msra.mxu0 0.0
        %1293 = vmatprep.subr.mxu0 0.0
        %1294 = vmatpush1.msra.mxu0 0.0
        %1295 = vmatprep.subr.mxu0 0.0
        %1296 = vmatpush1.msra.mxu0 0.0
        %1297 = vmatprep.subr.mxu0 0.0
        %1298 = vmatpush1.msra.mxu0 0.0
        %1299 = vmatprep.subr.mxu0 0.0
        %1300 = vmatpush1.msra.mxu0 0.0
        %1301 = vmatprep.mubr.f32.mxu0 0.0
        %1302 = vmatmul.mubr.f32.gmra.mrb[0].mxu0 %v1235
        %v1303 = vpop.f32.mrb[0].mxu0
        %v1304 = vadd.f32 %v1159, %v1303
        %v1305 = vpop.f32.mrb[0].mxu0
        %1306 = vdwg.mxu0
        %v1308 = vsel %vm1160, %v1082, 0
        %1310 = vmatprep.subr.mxu0 0.0
        %1311 = vmatpush1.msra.mxu0 %v1158
        %1312 = vmatprep.subr.mxu0 0.0
        %1313 = vmatpush1.msra.mxu0 0.0
        %1314 = vmatprep.subr.mxu0 0.0
        %1315 = vmatpush1.msra.mxu0 0.0
        %1316 = vmatprep.subr.mxu0 0.0
        %1317 = vmatpush1.msra.mxu0 0.0
        %1318 = vmatprep.subr.mxu0 0.0
        %1319 = vmatpush1.msra.mxu0 0.0
        %1320 = vmatprep.subr.mxu0 0.0
        %1321 = vmatpush1.msra.mxu0 0.0
        %1322 = vmatprep.subr.mxu0 0.0
        %1323 = vmatpush1.msra.mxu0 0.0
        %1324 = vmatprep.subr.mxu0 0.0
        %1325 = vmatpush1.msra.mxu0 0.0
        %1326 = vmatprep.subr.mxu0 0.0
        %1327 = vmatpush1.msra.mxu0 0.0
        %1328 = vmatprep.subr.mxu0 0.0
        %1329 = vmatpush1.msra.mxu0 0.0
        %1330 = vmatprep.subr.mxu0 0.0
        %1331 = vmatpush1.msra.mxu0 0.0
        %1332 = vmatprep.subr.mxu0 0.0
        %1333 = vmatpush1.msra.mxu0 0.0
        %1334 = vmatprep.subr.mxu0 0.0
        %1335 = vmatpush1.msra.mxu0 0.0
        %1336 = vmatprep.subr.mxu0 0.0
        %1337 = vmatpush1.msra.mxu0 0.0
        %1338 = vmatprep.subr.mxu0 0.0
        %1339 = vmatpush1.msra.mxu0 0.0
        %1340 = vmatprep.subr.mxu0 0.0
        %1341 = vmatpush1.msra.mxu0 0.0
        %1342 = vmatprep.subr.mxu0 0.0
        %1343 = vmatpush1.msra.mxu0 0.0
        %1344 = vmatprep.subr.mxu0 0.0
        %1345 = vmatpush1.msra.mxu0 0.0
        %1346 = vmatprep.subr.mxu0 0.0
        %1347 = vmatpush1.msra.mxu0 0.0
        %1348 = vmatprep.subr.mxu0 0.0
        %1349 = vmatpush1.msra.mxu0 0.0
        %1350 = vmatprep.subr.mxu0 0.0
        %1351 = vmatpush1.msra.mxu0 0.0
        %1352 = vmatprep.subr.mxu0 0.0
        %1353 = vmatpush1.msra.mxu0 0.0
        %1354 = vmatprep.subr.mxu0 0.0
        %1355 = vmatpush1.msra.mxu0 0.0
        %1356 = vmatprep.subr.mxu0 0.0
        %1357 = vmatpush1.msra.mxu0 0.0
        %1358 = vmatprep.subr.mxu0 0.0
        %1359 = vmatpush1.msra.mxu0 0.0
        %1360 = vmatprep.subr.mxu0 0.0
        %1361 = vmatpush1.msra.mxu0 0.0
        %1362 = vmatprep.subr.mxu0 0.0
        %1363 = vmatpush1.msra.mxu0 0.0
        %1364 = vmatprep.subr.mxu0 0.0
        %1365 = vmatpush1.msra.mxu0 0.0
        %1366 = vmatprep.subr.mxu0 0.0
        %1367 = vmatpush1.msra.mxu0 0.0
        %1368 = vmatprep.subr.mxu0 0.0
        %1369 = vmatpush1.msra.mxu0 0.0
        %1370 = vmatprep.subr.mxu0 0.0
        %1371 = vmatpush1.msra.mxu0 0.0
        %1372 = vmatprep.subr.mxu0 0.0
        %1373 = vmatpush1.msra.mxu0 0.0
        %1374 = vmatprep.mubr.f32.mxu0 0.0
        %1375 = vmatmul.mubr.f32.gmra.mrb[0].mxu0 %v1308
        %v1376 = vpop.f32.mrb[0].mxu0
        %v1377 = vadd.f32 %v1159, %v1376
        %v1378 = vpop.f32.mrb[0].mxu0
        %1379 = vdwg.mxu0
        %v1381 = vsel %vm1160, %v1155, 0
        %1383 = vmatprep.subr.mxu0 0.0
        %1384 = vmatpush1.msra.mxu0 %v1158
        %1385 = vmatprep.subr.mxu0 0.0
        %1386 = vmatpush1.msra.mxu0 0.0
        %1387 = vmatprep.subr.mxu0 0.0
        %1388 = vmatpush1.msra.mxu0 0.0
        %1389 = vmatprep.subr.mxu0 0.0
        %1390 = vmatpush1.msra.mxu0 0.0
        %1391 = vmatprep.subr.mxu0 0.0
        %1392 = vmatpush1.msra.mxu0 0.0
        %1393 = vmatprep.subr.mxu0 0.0
        %1394 = vmatpush1.msra.mxu0 0.0
        %1395 = vmatprep.subr.mxu0 0.0
        %1396 = vmatpush1.msra.mxu0 0.0
        %1397 = vmatprep.subr.mxu0 0.0
        %1398 = vmatpush1.msra.mxu0 0.0
        %1399 = vmatprep.subr.mxu0 0.0
        %1400 = vmatpush1.msra.mxu0 0.0
        %1401 = vmatprep.subr.mxu0 0.0
        %1402 = vmatpush1.msra.mxu0 0.0
        %1403 = vmatprep.subr.mxu0 0.0
        %1404 = vmatpush1.msra.mxu0 0.0
        %1405 = vmatprep.subr.mxu0 0.0
        %1406 = vmatpush1.msra.mxu0 0.0
        %1407 = vmatprep.subr.mxu0 0.0
        %1408 = vmatpush1.msra.mxu0 0.0
        %1409 = vmatprep.subr.mxu0 0.0
        %1410 = vmatpush1.msra.mxu0 0.0
        %1411 = vmatprep.subr.mxu0 0.0
        %1412 = vmatpush1.msra.mxu0 0.0
        %1413 = vmatprep.subr.mxu0 0.0
        %1414 = vmatpush1.msra.mxu0 0.0
        %1415 = vmatprep.subr.mxu0 0.0
        %1416 = vmatpush1.msra.mxu0 0.0
        %1417 = vmatprep.subr.mxu0 0.0
        %1418 = vmatpush1.msra.mxu0 0.0
        %1419 = vmatprep.subr.mxu0 0.0
        %1420 = vmatpush1.msra.mxu0 0.0
        %1421 = vmatprep.subr.mxu0 0.0
        %1422 = vmatpush1.msra.mxu0 0.0
        %1423 = vmatprep.subr.mxu0 0.0
        %1424 = vmatpush1.msra.mxu0 0.0
        %1425 = vmatprep.subr.mxu0 0.0
        %1426 = vmatpush1.msra.mxu0 0.0
        %1427 = vmatprep.subr.mxu0 0.0
        %1428 = vmatpush1.msra.mxu0 0.0
        %1429 = vmatprep.subr.mxu0 0.0
        %1430 = vmatpush1.msra.mxu0 0.0
        %1431 = vmatprep.subr.mxu0 0.0
        %1432 = vmatpush1.msra.mxu0 0.0
        %1433 = vmatprep.subr.mxu0 0.0
        %1434 = vmatpush1.msra.mxu0 0.0
        %1435 = vmatprep.subr.mxu0 0.0
        %1436 = vmatpush1.msra.mxu0 0.0
        %1437 = vmatprep.subr.mxu0 0.0
        %1438 = vmatpush1.msra.mxu0 0.0
        %1439 = vmatprep.subr.mxu0 0.0
        %1440 = vmatpush1.msra.mxu0 0.0
        %1441 = vmatprep.subr.mxu0 0.0
        %1442 = vmatpush1.msra.mxu0 0.0
        %1443 = vmatprep.subr.mxu0 0.0
        %1444 = vmatpush1.msra.mxu0 0.0
        %1445 = vmatprep.subr.mxu0 0.0
        %1446 = vmatpush1.msra.mxu0 0.0
        %1447 = vmatprep.mubr.f32.mxu0 0.0
        %1448 = vmatmul.mubr.f32.gmra.mrb[0].mxu0 %v1381
        %v1449 = vpop.f32.mrb[0].mxu0
        %v1450 = vadd.f32 %v1159, %v1449
        %v1451 = vpop.f32.mrb[0].mxu0
        %1452 = vdwg.mxu0
        %v1453 = vlaneseq
        %v1454 = vand.u32 %v1453, 127
        %vm1455 = vcmp.lt.s32.totalorder %v1454, 1
        %v1456 = vmul.f32 %v1231, 1.442695
        %v1457 = vpow.pop %v1456
        %v1458 = vmul.f32 %v1304, 1.442695
        %v1459 = vpow.pop %v1458
        %v1460 = vmul.f32 %v1377, 1.442695
        %v1461 = vpow.pop %v1460
        %v1462 = vmul.f32 %v1450, 1.442695
        %v1463 = vpow.pop %v1462
        %v1464 = vsel %vm1455, %v1231, %v1457
        %v1465 = vsel %vm1455, %v1304, %v1459
        %v1466 = vsel %vm1455, %v1377, %v1461
        %v1467 = vsel %vm1455, %v1450, %v1463
        %vm1468 = vcmask 8192
        %1469 = vst.msk [vmem:[%s266] sm:$0x1] %vm1468, %v1464
        %1470 = vst.msk [vmem:[%s266 + $0x1] sm:$0x1] %vm1468, %v1465
        %1471 = vst.msk [vmem:[%s266 + $0x2] sm:$0x1] %vm1468, %v1466
        %1472 = vst.msk [vmem:[%s266 + $0x3] sm:$0x1] %vm1468, %v1467
        %s1473 = smul.u32 4, %s17
        %p1474 = scmp.lt.s32.totalorder %s1473, 7
        %s1475 = scalar_select %p1474, %s1473, 7
        %s1476 = scalar_lea.vmem %s5, %s1475
        // Predicated region
        $region45: #{tpu_custom_call.1} parent=39 // pred_check
          %p1477 = pneg %p150
        $region46: #{tpu_custom_call.1} parent=39 // pred_check_branch
          %1479 = sbr.rel (%p1477) target = $region48
        $region47: #{tpu_custom_call.1} parent=39 // pred_region
          %s1480 = smul.u32 4, %s17
        $region48: #{tpu_custom_call.1} parent=39 // pred_fallthru
          _
      $region40: #{tpu_custom_call.1} parent=5 // pred_fallthru
        _
      %p1481 = scmp.le.s32.totalorder 2, %s12
      // Predicated region
      $region49: #{tpu_custom_call.1} parent=5 // pred_check
        %p1482 = pneg %p1481
      $region50: #{tpu_custom_call.1} parent=5 // pred_check_branch
        %1484 = sbr.rel (%p1482) target = $region52
      $region51: #{tpu_custom_call.1} parent=5 // pred_region
        %s1485 = ssub.s32 %s12, 2
        // Predicated region
        $region53: #{tpu_custom_call.1} parent=51 // pred_check
          %p1486 = pneg %p156
        $region54: #{tpu_custom_call.1} parent=51 // pred_check_branch
          %1488 = sbr.rel (%p1486) target = $region56
        $region55: #{tpu_custom_call.1} parent=51 // pred_region
          %s1489 = smul.u32 4, %s18
          %p1490 = scmp.lt.s32.totalorder %s1489, 7
          %s1491 = scalar_select %p1490, %s1489, 7
          %s1492 = scalar_lea.vmem %s5, %s1491
        $region56: #{tpu_custom_call.1} parent=51 // pred_fallthru
          _
      $region52: #{tpu_custom_call.1} parent=5 // pred_fallthru
        _
    $region6: #{tpu_custom_call.1} parent=1 // loop_footer
      %s16 = sadd.s32 1, %s12
    $region7: #{tpu_custom_call.1} parent=1 // loop_footer_branch
      %11 = sbr.rel target = $region3
    $region8: #{tpu_custom_call.1} parent=1 // loop_exit
      _
    %1493 = vsyncpa [#allocation3], 1
    %s1494 = scalar_lea.sflag [#allocation3], 1
    %1495 = vsyncpa %s1494, 1

</llo_original>
